<compile_context>
chip_gen: v6e
topology: v6e:2x2x1
jax: 0.10.0
libtpu: 0.0.40
codegen_flags: <defaults>
</compile_context>

<pallas_src>
import jax
import jax.numpy as jnp
from jax import lax
from jax.experimental import pallas as pl
from jax.experimental.pallas import tpu as pltpu

# ---------------------------------------------------------------------------
# Problem sizes (consistent with the module config) and packed-tile layout
# ---------------------------------------------------------------------------
N_T, N_O = 16, 24          # node counts: target / other
F_T, F_O = 24, 16          # raw feature sizes (target is feature_sizes index 0)
HIDDEN = 32                # config.hidden_dim
NUM_LAYERS = 2             # config.num_layers
ARG_NUM = 16               # self.arg_num
LABEL_NUM = 3              # label_num

PAD = 128                  # every tile is one lane-dense 128x128 tile
DBLK = 40                  # lane offset of the "other"-node feature/output block
ONE_T_LANE = 80            # constant-1 lane of real target rows (bias/rel_emb fold)
ONE_O_LANE = 81            # constant-1 lane of real other rows

# slots in the per-call graph stack
G_H_AUG, G_A_AUG, G_H_ORI, G_A_ORI = range(4)
# slots in the one-time packed weight stack
W_M1L0, W_M1L1, W_M2L0, W_M2L1 = range(4)

RELATIONS = (("t2o", "target", "other"), ("o2t", "other", "target"))
NTYPES = ("target", "other")


# ---------------------------------------------------------------------------
# The single fused kernel: 4 CompGCN layers, 2 MXU dots each (8 dots total)
# ---------------------------------------------------------------------------
def _fused_forward_kernel(w_ref, g_ref, out_ref):
    f32 = jnp.float32
    bf16 = jnp.bfloat16

    # Row / lane masks, built once (target rows 0:16, other rows 16:40).
    row = lax.broadcasted_iota(jnp.int32, (PAD, PAD), 0)
    lane = lax.broadcasted_iota(jnp.int32, (PAD, PAD), 1)
    is_t = row < N_T
    is_o = (row >= N_T) & (row < N_T + N_O)
    # constant-1 lanes for REAL rows only (pad rows stay exactly zero).
    ones_tile = jnp.where((is_t & (lane == ONE_T_LANE)) |
                          (is_o & (lane == ONE_O_LANE)), 1.0, 0.0).astype(f32)

    def layer(h, w_slot, a_slot, d_out, do_relu):
        """One CompGCN layer on the stacked node tile.

        Packed-weight dot:     P = H @ Wpack
          P[target, 0:d]    = self(target) + bias        (via ones_t lane)
          P[target, 40:40+d]= (h_t - e_t2o) @ W_t2o       (t2o messages)
          P[other,  0:d]    = (f_o - e_o2t) @ W_o2t       (o2t messages)
          P[other,  40:40+d]= self(other) + bias
        Combined-adjacency dot: Q = Acomb @ P
          Q[target, 0:d]    = A_o2t @ o2t-messages   (lane-aligned with self)
          Q[other,  40:40+d]= A_t2o @ t2o-messages
        """
        w = w_ref[w_slot]                                   # load at use (bf16)
        a = g_ref[a_slot]                                   # load at use (bf16)
        p = jnp.dot(h.astype(bf16), w, preferred_element_type=f32)
        q = jnp.dot(a, p.astype(bf16), preferred_element_type=f32)
        o = p + q                                           # f32 epilogue
        if do_relu:
            o = jnp.maximum(o, 0.0)
        keep = (is_t & (lane < d_out)) | \
               (is_o & (lane >= DBLK) & (lane < DBLK + d_out))
        return jnp.where(keep, o, 0.0)

    # ---------------- model1 on the augmented graph ----------------
    h = g_ref[G_H_AUG]                                      # bf16 input tile
    h = layer(h, W_M1L0, G_A_AUG, HIDDEN, True) + ones_tile
    logits1 = layer(h, W_M1L1, G_A_AUG, ARG_NUM, False)     # target rows, lanes 0:16

    # ---------------- model2 on the original graph ----------------
    # target features = [logits1 | h_ori_target] (weight rows pre-permuted on
    # host); other features = raw h_ori_other (look_up_table folded into W).
    h2 = g_ref[G_H_ORI].astype(f32) + jnp.where(is_t, logits1, 0.0)
    h2 = layer(h2, W_M2L0, G_A_ORI, HIDDEN, True) + ones_tile
    out = layer(h2, W_M2L1, G_A_ORI, LABEL_NUM, False)

    out_ref[...] = out[:N_T, :].astype(out_ref.dtype)       # lane-dense (16,128)


# ---------------------------------------------------------------------------
# Host-side packing: one-time weight prep + per-call graph prep
# ---------------------------------------------------------------------------
def _pack_weights(w_self_t, w_t2o, w_self_o, w_o2t,
                  bias_t, const_t2o, bias_o, const_o2t):
    """Build one [128,128] packed weight tile (f32; cast to bf16 when stacked).

    Input rows 0:Ft      -> target-row features (lanes 0:Ft of H)
    Input rows 40:40+Fo  -> other-row features  (lanes 40:40+Fo of H)
    Input row  80 / 81   -> constant-one lane of target / other rows
    Output cols 0:D      -> target-destination block (target self | o2t msgs)
    Output cols 40:40+D  -> other-destination block  (other self | t2o msgs)
    """
    d = w_self_t.shape[1]
    ft, fo = w_self_t.shape[0], w_self_o.shape[0]
    w = jnp.zeros((PAD, PAD), jnp.float32)
    w = w.at[0:ft, 0:d].set(w_self_t.astype(jnp.float32))
    w = w.at[0:ft, DBLK:DBLK + d].set(w_t2o.astype(jnp.float32))
    w = w.at[DBLK:DBLK + fo, 0:d].set(w_o2t.astype(jnp.float32))
    w = w.at[DBLK:DBLK + fo, DBLK:DBLK + d].set(w_self_o.astype(jnp.float32))
    w = w.at[ONE_T_LANE, 0:d].set(bias_t.astype(jnp.float32))
    w = w.at[ONE_T_LANE, DBLK:DBLK + d].set(const_t2o.astype(jnp.float32))
    w = w.at[ONE_O_LANE, DBLK:DBLK + d].set(bias_o.astype(jnp.float32))
    w = w.at[ONE_O_LANE, 0:d].set(const_o2t.astype(jnp.float32))
    return w


def prepare_params(params):
    """One-time prep: fold bias / rel_emb / look_up_table / concat into a
    [4,128,128] bf16 packed-weight stack (call once, reuse every forward)."""
    m1, m2 = params["model1"], params["model2"]
    lut_w = params["lut_w"]
    lut_b = params["lut_b"][0]

    def shared(layer):
        ws, wt, wo = layer["w_self"], layer["w_rel"]["t2o"], layer["w_rel"]["o2t"]
        et, eo = layer["rel_emb"]["t2o"][0], layer["rel_emb"]["o2t"][0]
        b = layer["bias"][0]
        return _pack_weights(w_self_t=ws, w_t2o=wt, w_self_o=ws, w_o2t=wo,
                             bias_t=b, const_t2o=-(et @ wt),
                             bias_o=b, const_o2t=-(eo @ wo))

    w_m1l0 = shared(m1[0])
    w_m1l1 = shared(m1[1])
    w_m2l1 = shared(m2[1])

    # model2 layer 0: target features arrive as [logits1 | h_ori_target]
    # (row-permuted weights); other features are raw h_ori_other with the
    # look_up_table Linear folded in (LUT_W @ W products, constants on the
    # ones lane).  Mathematically identical to cat + Linear + CompGCN layer.
    l0 = m2[0]
    ws, wt, wo = l0["w_self"], l0["w_rel"]["t2o"], l0["w_rel"]["o2t"]
    et, eo = l0["rel_emb"]["t2o"][0], l0["rel_emb"]["o2t"][0]
    b = l0["bias"][0]

    def perm(w):   # original rows [h_ori_t (0:F_T) | logits1 (F_T:)] -> [logits1 | h_ori_t]
        return jnp.concatenate([w[F_T:], w[:F_T]], axis=0)

    w_m2l0 = _pack_weights(
        w_self_t=perm(ws), w_t2o=perm(wt),
        w_self_o=lut_w @ ws, w_o2t=lut_w @ wo,
        bias_t=b, const_t2o=-(et @ wt),
        bias_o=b + lut_b @ ws, const_o2t=(lut_b - eo) @ wo)

    return jnp.stack([w_m1l0, w_m1l1, w_m2l0, w_m2l1]).astype(jnp.bfloat16)


def _pack_features(h_t, h_o, t_lane_offset):
    x = jnp.zeros((PAD, PAD), jnp.float32)
    x = x.at[0:N_T, t_lane_offset:t_lane_offset + h_t.shape[1]].set(
        h_t.astype(jnp.float32))
    x = x.at[N_T:N_T + N_O, DBLK:DBLK + h_o.shape[1]].set(
        h_o.astype(jnp.float32))
    x = x.at[0:N_T, ONE_T_LANE].set(1.0)
    x = x.at[N_T:N_T + N_O, ONE_O_LANE].set(1.0)
    return x


def _pack_adj(adj_t2o, adj_o2t):
    # combined anti-block-diagonal adjacency: target rows aggregate other-row
    # messages (o2t) and other rows aggregate target-row messages (t2o).
    a = jnp.zeros((PAD, PAD), jnp.float32)
    a = a.at[0:N_T, N_T:N_T + N_O].set(adj_o2t.astype(jnp.float32))
    a = a.at[N_T:N_T + N_O, 0:N_T].set(adj_t2o.astype(jnp.float32))
    return a


def prepare_graphs(g_aug, g_ori):
    """Per-call prep (jitted together with the kernel call): 4 bf16 tiles."""
    h_aug = _pack_features(g_aug["h"]["target"], g_aug["h"]["other"], 0)
    a_aug = _pack_adj(g_aug["adj"]["t2o"], g_aug["adj"]["o2t"])
    # target lanes 0:ARG_NUM are reserved for logits1 (added in-kernel).
    h_ori = _pack_features(g_ori["h"]["target"], g_ori["h"]["other"], ARG_NUM)
    a_ori = _pack_adj(g_ori["adj"]["t2o"], g_ori["adj"]["o2t"])
    return jnp.stack([h_aug, a_aug, h_ori, a_ori]).astype(jnp.bfloat16)


def fused_forward(wstack, gstack):
    out = pl.pallas_call(
        _fused_forward_kernel,
        out_shape=jax.ShapeDtypeStruct((N_T, PAD), jnp.float32),
        in_specs=[pl.BlockSpec(memory_space=pltpu.MemorySpace.VMEM),
                  pl.BlockSpec(memory_space=pltpu.MemorySpace.VMEM)],
        out_specs=pl.BlockSpec(memory_space=pltpu.MemorySpace.VMEM),
    )(wstack, gstack)
    return out[:, :LABEL_NUM]


def compgcn_aug_p_forward(wstack, g_aug, g_ori):
    return fused_forward(wstack, prepare_graphs(g_aug, g_ori))


# ---------------------------------------------------------------------------
# Parameters and a pure-JAX (unpadded, f32) reference for validation
# ---------------------------------------------------------------------------
def init_compgcn_params(key, layer_dims):
    """layer_dims = [in, hidden, ..., out]; one param dict per layer."""
    params = []
    for l in range(len(layer_dims) - 1):
        din, dout = layer_dims[l], layer_dims[l + 1]
        key, k1, k2 = jax.random.split(key, 3)
        scale = 1.0 / jnp.sqrt(jnp.float32(din))
        layer = {
            "w_self": jax.random.normal(k1, (din, dout), jnp.float32) * scale,
            "bias": jax.random.normal(k2, (1, dout), jnp.float32) * 0.01,
            "w_rel": {},
            "rel_emb": {},
        }
        for rname, _, _ in RELATIONS:
            key, kr, ke = jax.random.split(key, 3)
            layer["w_rel"][rname] = (
                jax.random.normal(kr, (din, dout), jnp.float32) * scale)
            layer["rel_emb"][rname] = (
                jax.random.normal(ke, (1, din), jnp.float32) * 0.1)
        params.append(layer)
    return params, key


def reference_forward(params, g_aug, g_ori):
    """Unpadded pure-jnp forward with identical semantics (for validation)."""
    hi = jax.lax.Precision.HIGHEST

    def dot(a, b):
        return jnp.dot(a, b, precision=hi)

    def run_layers(layers, adj, h):
        n = len(layers)
        for l, lp in enumerate(layers):
            new_h = {}
            for t in NTYPES:
                out = dot(h[t], lp["w_self"])
                for rname, src, dst in RELATIONS:
                    if dst == t:
                        out = out + dot(
                            dot(adj[rname], h[src] - lp["rel_emb"][rname]),
                            lp["w_rel"][rname])
                out = out + lp["bias"]
                if l < n - 1:
                    out = jnp.maximum(out, 0.0)
                new_h[t] = out
            h = new_h
        return h

    logits1 = run_layers(params["model1"], g_aug["adj"], dict(g_aug["h"]))["target"]
    feat_ori = {
        "target": jnp.concatenate([g_ori["h"]["target"], logits1], axis=-1),
        "other": dot(g_ori["h"]["other"], params["lut_w"]) + params["lut_b"],
    }
    return run_layers(params["model2"], g_ori["adj"], feat_ori)["target"]


# ---------------------------------------------------------------------------
# Driver
# ---------------------------------------------------------------------------
if __name__ == "__main__":
    key = jax.random.PRNGKey(0)

    # ---- deterministic parameters ----
    params = {}
    params["model1"], key = init_compgcn_params(key, [F_T, HIDDEN, ARG_NUM])
    params["model2"], key = init_compgcn_params(
        key, [F_T + ARG_NUM, HIDDEN, LABEL_NUM])
    key, k1, k2 = jax.random.split(key, 3)
    params["lut_w"] = (
        jax.random.normal(k1, (F_O, F_T + ARG_NUM), jnp.float32)
        / jnp.sqrt(jnp.float32(F_O)))
    params["lut_b"] = jax.random.normal(k2, (1, F_T + ARG_NUM), jnp.float32) * 0.01

    # ---- deterministic synthetic hetero graphs (dense adjacency, A[dst,src]) ----
    def make_graph(key, feat_dims):
        key, ka, kb, kf1, kf2 = jax.random.split(key, 5)
        adj = {
            "t2o": jax.random.bernoulli(ka, 0.3, (N_O, N_T)).astype(jnp.float32),
            "o2t": jax.random.bernoulli(kb, 0.3, (N_T, N_O)).astype(jnp.float32),
        }
        h = {
            "target": jax.random.normal(kf1, (N_T, feat_dims["target"]),
                                        jnp.float32),
            "other": jax.random.normal(kf2, (N_O, feat_dims["other"]),
                                       jnp.float32),
        }
        return {"adj": adj, "h": h}, key

    # g_aug: all node features already in the target feature space (dim F_T)
    g_aug, key = make_graph(key, {"target": F_T, "other": F_T})
    # g_ori: raw per-type feature sizes
    g_ori, key = make_graph(key, {"target": F_T, "other": F_O})

    # One-time parameter packing (hoisted out of the per-call path).
    wstack = jax.block_until_ready(prepare_params(params))

    fwd = jax.jit(compgcn_aug_p_forward)
    logits = jax.block_until_ready(fwd(wstack, g_aug, g_ori))

    ref = jax.block_until_ready(reference_forward(params, g_aug, g_ori))

    assert logits.shape == (N_T, LABEL_NUM), logits.shape
    assert logits.dtype == jnp.float32
    assert bool(jnp.all(jnp.isfinite(logits)))
    # bf16 MXU operands (f32 accumulate) -> check error relative to data scale.
    err = float(jnp.max(jnp.abs(logits - ref)))
    scale = float(jnp.max(jnp.abs(ref)))
    assert err <= 5e-2 * max(1.0, scale), (err, scale)
    print("KERNEL_OK")
</pallas_src>

<mosaic_0001>
module attributes {stable_mosaic.version = 11 : i64} {
  func.func @_fused_forward_kernel(%arg0: memref<4x128x128xbf16, #tpu.memory_space<vmem>>, %arg1: memref<4x128x128xbf16, #tpu.memory_space<vmem>>, %arg2: memref<16x128xf32, #tpu.memory_space<vmem>>) attributes {dimension_semantics = [], scalar_prefetch = 0 : i64, scratch_operands = 0 : i64, tpu.core_type = #tpu.core_type<tc>} {
    %0 = tpu.iota {dimensions = array<i32: 0>} : vector<128x128xi32>
    %1 = tpu.iota {dimensions = array<i32: 1>} : vector<128x128xi32>
    %c16_i32 = arith.constant 16 : i32
    %2 = vector.broadcast %c16_i32 : i32 to vector<128x128xi32>
    %3 = arith.cmpi slt, %0, %2 : vector<128x128xi32>
    %c16_i32_0 = arith.constant 16 : i32
    %4 = vector.broadcast %c16_i32_0 : i32 to vector<128x128xi32>
    %5 = arith.cmpi sge, %0, %4 : vector<128x128xi32>
    %c40_i32 = arith.constant 40 : i32
    %6 = vector.broadcast %c40_i32 : i32 to vector<128x128xi32>
    %7 = arith.cmpi slt, %0, %6 : vector<128x128xi32>
    %8 = arith.andi %5, %7 : vector<128x128xi1>
    %c80_i32 = arith.constant 80 : i32
    %9 = vector.broadcast %c80_i32 : i32 to vector<128x128xi32>
    %10 = arith.cmpi eq, %1, %9 : vector<128x128xi32>
    %11 = arith.andi %3, %10 : vector<128x128xi1>
    %c81_i32 = arith.constant 81 : i32
    %12 = vector.broadcast %c81_i32 : i32 to vector<128x128xi32>
    %13 = arith.cmpi eq, %1, %12 : vector<128x128xi32>
    %14 = arith.andi %8, %13 : vector<128x128xi1>
    %15 = arith.ori %11, %14 : vector<128x128xi1>
    %cst = arith.constant 1.000000e+00 : f32
    %cst_1 = arith.constant 0.000000e+00 : f32
    %16 = vector.broadcast %cst : f32 to vector<128x128xf32>
    %17 = vector.broadcast %cst_1 : f32 to vector<128x128xf32>
    %18 = arith.select %15, %16, %17 : vector<128x128xi1>, vector<128x128xf32>
    %c0 = arith.constant 0 : index
    %c0_2 = arith.constant 0 : index
    %c0_3 = arith.constant 0 : index
    %19 = vector.load %arg1[%c0, %c0_2, %c0_3] : memref<4x128x128xbf16, #tpu.memory_space<vmem>>, vector<1x128x128xbf16>
    %20 = vector.shape_cast %19 : vector<1x128x128xbf16> to vector<128x128xbf16>
    %c0_4 = arith.constant 0 : index
    %c0_5 = arith.constant 0 : index
    %c0_6 = arith.constant 0 : index
    %21 = vector.load %arg0[%c0_4, %c0_5, %c0_6] : memref<4x128x128xbf16, #tpu.memory_space<vmem>>, vector<1x128x128xbf16>
    %22 = vector.shape_cast %21 : vector<1x128x128xbf16> to vector<128x128xbf16>
    %c1 = arith.constant 1 : index
    %c0_7 = arith.constant 0 : index
    %c0_8 = arith.constant 0 : index
    %23 = vector.load %arg1[%c1, %c0_7, %c0_8] : memref<4x128x128xbf16, #tpu.memory_space<vmem>>, vector<1x128x128xbf16>
    %24 = vector.shape_cast %23 : vector<1x128x128xbf16> to vector<128x128xbf16>
    %cst_9 = arith.constant dense<0.000000e+00> : vector<128x128xf32>
    %25 = tpu.matmul %20, %22, %cst_9 {dimension_numbers = #tpu.dot_dimension_numbers<[1], [0], [0], [1], [0, 0, 1, 1], [], []>} : vector<128x128xbf16>, vector<128x128xbf16>, vector<128x128xf32> -> vector<128x128xf32>
    %26 = arith.truncf %25 : vector<128x128xf32> to vector<128x128xbf16>
    %cst_10 = arith.constant dense<0.000000e+00> : vector<128x128xf32>
    %27 = tpu.matmul %24, %26, %cst_10 {dimension_numbers = #tpu.dot_dimension_numbers<[1], [0], [0], [1], [0, 0, 1, 1], [], []>} : vector<128x128xbf16>, vector<128x128xbf16>, vector<128x128xf32> -> vector<128x128xf32>
    %28 = arith.addf %25, %27 : vector<128x128xf32>
    %cst_11 = arith.constant 0.000000e+00 : f32
    %29 = vector.broadcast %cst_11 : f32 to vector<128x128xf32>
    %30 = arith.maximumf %28, %29 : vector<128x128xf32>
    %c32_i32 = arith.constant 32 : i32
    %31 = vector.broadcast %c32_i32 : i32 to vector<128x128xi32>
    %32 = arith.cmpi slt, %1, %31 : vector<128x128xi32>
    %33 = arith.andi %3, %32 : vector<128x128xi1>
    %c40_i32_12 = arith.constant 40 : i32
    %34 = vector.broadcast %c40_i32_12 : i32 to vector<128x128xi32>
    %35 = arith.cmpi sge, %1, %34 : vector<128x128xi32>
    %36 = arith.andi %8, %35 : vector<128x128xi1>
    %c72_i32 = arith.constant 72 : i32
    %37 = vector.broadcast %c72_i32 : i32 to vector<128x128xi32>
    %38 = arith.cmpi slt, %1, %37 : vector<128x128xi32>
    %39 = arith.andi %36, %38 : vector<128x128xi1>
    %40 = arith.ori %33, %39 : vector<128x128xi1>
    %cst_13 = arith.constant 0.000000e+00 : f32
    %41 = vector.broadcast %cst_13 : f32 to vector<128x128xf32>
    %42 = arith.select %40, %30, %41 : vector<128x128xi1>, vector<128x128xf32>
    %43 = arith.addf %42, %18 : vector<128x128xf32>
    %c1_14 = arith.constant 1 : index
    %c0_15 = arith.constant 0 : index
    %c0_16 = arith.constant 0 : index
    %44 = vector.load %arg0[%c1_14, %c0_15, %c0_16] : memref<4x128x128xbf16, #tpu.memory_space<vmem>>, vector<1x128x128xbf16>
    %45 = vector.shape_cast %44 : vector<1x128x128xbf16> to vector<128x128xbf16>
    %c1_17 = arith.constant 1 : index
    %c0_18 = arith.constant 0 : index
    %c0_19 = arith.constant 0 : index
    %46 = vector.load %arg1[%c1_17, %c0_18, %c0_19] : memref<4x128x128xbf16, #tpu.memory_space<vmem>>, vector<1x128x128xbf16>
    %47 = vector.shape_cast %46 : vector<1x128x128xbf16> to vector<128x128xbf16>
    %48 = arith.truncf %43 : vector<128x128xf32> to vector<128x128xbf16>
    %cst_20 = arith.constant dense<0.000000e+00> : vector<128x128xf32>
    %49 = tpu.matmul %48, %45, %cst_20 {dimension_numbers = #tpu.dot_dimension_numbers<[1], [0], [0], [1], [0, 0, 1, 1], [], []>} : vector<128x128xbf16>, vector<128x128xbf16>, vector<128x128xf32> -> vector<128x128xf32>
    %50 = arith.truncf %49 : vector<128x128xf32> to vector<128x128xbf16>
    %cst_21 = arith.constant dense<0.000000e+00> : vector<128x128xf32>
    %51 = tpu.matmul %47, %50, %cst_21 {dimension_numbers = #tpu.dot_dimension_numbers<[1], [0], [0], [1], [0, 0, 1, 1], [], []>} : vector<128x128xbf16>, vector<128x128xbf16>, vector<128x128xf32> -> vector<128x128xf32>
    %52 = arith.addf %49, %51 : vector<128x128xf32>
    %c16_i32_22 = arith.constant 16 : i32
    %53 = vector.broadcast %c16_i32_22 : i32 to vector<128x128xi32>
    %54 = arith.cmpi slt, %1, %53 : vector<128x128xi32>
    %55 = arith.andi %3, %54 : vector<128x128xi1>
    %c40_i32_23 = arith.constant 40 : i32
    %56 = vector.broadcast %c40_i32_23 : i32 to vector<128x128xi32>
    %57 = arith.cmpi sge, %1, %56 : vector<128x128xi32>
    %58 = arith.andi %8, %57 : vector<128x128xi1>
    %c56_i32 = arith.constant 56 : i32
    %59 = vector.broadcast %c56_i32 : i32 to vector<128x128xi32>
    %60 = arith.cmpi slt, %1, %59 : vector<128x128xi32>
    %61 = arith.andi %58, %60 : vector<128x128xi1>
    %62 = arith.ori %55, %61 : vector<128x128xi1>
    %cst_24 = arith.constant 0.000000e+00 : f32
    %63 = vector.broadcast %cst_24 : f32 to vector<128x128xf32>
    %64 = arith.select %62, %52, %63 : vector<128x128xi1>, vector<128x128xf32>
    %c2 = arith.constant 2 : index
    %c0_25 = arith.constant 0 : index
    %c0_26 = arith.constant 0 : index
    %65 = vector.load %arg1[%c2, %c0_25, %c0_26] : memref<4x128x128xbf16, #tpu.memory_space<vmem>>, vector<1x128x128xbf16>
    %66 = vector.shape_cast %65 : vector<1x128x128xbf16> to vector<128x128xbf16>
    %67 = arith.extf %66 : vector<128x128xbf16> to vector<128x128xf32>
    %cst_27 = arith.constant 0.000000e+00 : f32
    %68 = vector.broadcast %cst_27 : f32 to vector<128x128xf32>
    %69 = arith.select %3, %64, %68 : vector<128x128xi1>, vector<128x128xf32>
    %70 = arith.addf %67, %69 : vector<128x128xf32>
    %c2_28 = arith.constant 2 : index
    %c0_29 = arith.constant 0 : index
    %c0_30 = arith.constant 0 : index
    %71 = vector.load %arg0[%c2_28, %c0_29, %c0_30] : memref<4x128x128xbf16, #tpu.memory_space<vmem>>, vector<1x128x128xbf16>
    %72 = vector.shape_cast %71 : vector<1x128x128xbf16> to vector<128x128xbf16>
    %c3 = arith.constant 3 : index
    %c0_31 = arith.constant 0 : index
    %c0_32 = arith.constant 0 : index
    %73 = vector.load %arg1[%c3, %c0_31, %c0_32] : memref<4x128x128xbf16, #tpu.memory_space<vmem>>, vector<1x128x128xbf16>
    %74 = vector.shape_cast %73 : vector<1x128x128xbf16> to vector<128x128xbf16>
    %75 = arith.truncf %70 : vector<128x128xf32> to vector<128x128xbf16>
    %cst_33 = arith.constant dense<0.000000e+00> : vector<128x128xf32>
    %76 = tpu.matmul %75, %72, %cst_33 {dimension_numbers = #tpu.dot_dimension_numbers<[1], [0], [0], [1], [0, 0, 1, 1], [], []>} : vector<128x128xbf16>, vector<128x128xbf16>, vector<128x128xf32> -> vector<128x128xf32>
    %77 = arith.truncf %76 : vector<128x128xf32> to vector<128x128xbf16>
    %cst_34 = arith.constant dense<0.000000e+00> : vector<128x128xf32>
    %78 = tpu.matmul %74, %77, %cst_34 {dimension_numbers = #tpu.dot_dimension_numbers<[1], [0], [0], [1], [0, 0, 1, 1], [], []>} : vector<128x128xbf16>, vector<128x128xbf16>, vector<128x128xf32> -> vector<128x128xf32>
    %79 = arith.addf %76, %78 : vector<128x128xf32>
    %cst_35 = arith.constant 0.000000e+00 : f32
    %80 = vector.broadcast %cst_35 : f32 to vector<128x128xf32>
    %81 = arith.maximumf %79, %80 : vector<128x128xf32>
    %c32_i32_36 = arith.constant 32 : i32
    %82 = vector.broadcast %c32_i32_36 : i32 to vector<128x128xi32>
    %83 = arith.cmpi slt, %1, %82 : vector<128x128xi32>
    %84 = arith.andi %3, %83 : vector<128x128xi1>
    %c40_i32_37 = arith.constant 40 : i32
    %85 = vector.broadcast %c40_i32_37 : i32 to vector<128x128xi32>
    %86 = arith.cmpi sge, %1, %85 : vector<128x128xi32>
    %87 = arith.andi %8, %86 : vector<128x128xi1>
    %c72_i32_38 = arith.constant 72 : i32
    %88 = vector.broadcast %c72_i32_38 : i32 to vector<128x128xi32>
    %89 = arith.cmpi slt, %1, %88 : vector<128x128xi32>
    %90 = arith.andi %87, %89 : vector<128x128xi1>
    %91 = arith.ori %84, %90 : vector<128x128xi1>
    %cst_39 = arith.constant 0.000000e+00 : f32
    %92 = vector.broadcast %cst_39 : f32 to vector<128x128xf32>
    %93 = arith.select %91, %81, %92 : vector<128x128xi1>, vector<128x128xf32>
    %94 = arith.addf %93, %18 : vector<128x128xf32>
    %c3_40 = arith.constant 3 : index
    %c0_41 = arith.constant 0 : index
    %c0_42 = arith.constant 0 : index
    %95 = vector.load %arg0[%c3_40, %c0_41, %c0_42] : memref<4x128x128xbf16, #tpu.memory_space<vmem>>, vector<1x128x128xbf16>
    %96 = vector.shape_cast %95 : vector<1x128x128xbf16> to vector<128x128xbf16>
    %c3_43 = arith.constant 3 : index
    %c0_44 = arith.constant 0 : index
    %c0_45 = arith.constant 0 : index
    %97 = vector.load %arg1[%c3_43, %c0_44, %c0_45] : memref<4x128x128xbf16, #tpu.memory_space<vmem>>, vector<1x128x128xbf16>
    %98 = vector.shape_cast %97 : vector<1x128x128xbf16> to vector<128x128xbf16>
    %99 = arith.truncf %94 : vector<128x128xf32> to vector<128x128xbf16>
    %cst_46 = arith.constant dense<0.000000e+00> : vector<128x128xf32>
    %100 = tpu.matmul %99, %96, %cst_46 {dimension_numbers = #tpu.dot_dimension_numbers<[1], [0], [0], [1], [0, 0, 1, 1], [], []>} : vector<128x128xbf16>, vector<128x128xbf16>, vector<128x128xf32> -> vector<128x128xf32>
    %101 = arith.truncf %100 : vector<128x128xf32> to vector<128x128xbf16>
    %cst_47 = arith.constant dense<0.000000e+00> : vector<128x128xf32>
    %102 = tpu.matmul %98, %101, %cst_47 {dimension_numbers = #tpu.dot_dimension_numbers<[1], [0], [0], [1], [0, 0, 1, 1], [], []>} : vector<128x128xbf16>, vector<128x128xbf16>, vector<128x128xf32> -> vector<128x128xf32>
    %103 = arith.addf %100, %102 : vector<128x128xf32>
    %c3_i32 = arith.constant 3 : i32
    %104 = vector.broadcast %c3_i32 : i32 to vector<128x128xi32>
    %105 = arith.cmpi slt, %1, %104 : vector<128x128xi32>
    %106 = arith.andi %3, %105 : vector<128x128xi1>
    %c40_i32_48 = arith.constant 40 : i32
    %107 = vector.broadcast %c40_i32_48 : i32 to vector<128x128xi32>
    %108 = arith.cmpi sge, %1, %107 : vector<128x128xi32>
    %109 = arith.andi %8, %108 : vector<128x128xi1>
    %c43_i32 = arith.constant 43 : i32
    %110 = vector.broadcast %c43_i32 : i32 to vector<128x128xi32>
    %111 = arith.cmpi slt, %1, %110 : vector<128x128xi32>
    %112 = arith.andi %109, %111 : vector<128x128xi1>
    %113 = arith.ori %106, %112 : vector<128x128xi1>
    %cst_49 = arith.constant 0.000000e+00 : f32
    %114 = vector.broadcast %cst_49 : f32 to vector<128x128xf32>
    %115 = arith.select %113, %103, %114 : vector<128x128xi1>, vector<128x128xf32>
    %116 = vector.extract_strided_slice %115 {offsets = [0, 0], sizes = [16, 128], strides = [1, 1]} : vector<128x128xf32> to vector<16x128xf32>
    %c0_50 = arith.constant 0 : index
    %c0_51 = arith.constant 0 : index
    %117 = vector.load %arg2[%c0_50, %c0_51] : memref<16x128xf32, #tpu.memory_space<vmem>>, vector<16x128xf32>
    tpu.vector_store %arg2[%c0_50, %c0_51], %116 {strides = array<i32>} : memref<16x128xf32, #tpu.memory_space<vmem>>, vector<16x128xf32>,
    return
  }
}

</mosaic_0001>

<llo_original>
// kernel: compgcn_aug_p_forward.1
$region0: #{compgcn_aug_p_forward.1}
  #allocation0 [shape = 'u32[]', space=smem, size = 0x4, offset = 0x4, fixed_abs, tag = 'smem constant byte address 0x4 - core index']
  #allocation1 [shape = 'u32[144,128]{1,0:T(1,128)}', space=vmem, size = 0x12000, scoped, tag = 'internal scratch']
  %s0 = inlined_call_operand.vmem [shape: bf16[4,128,128], index: 0, kind: input, shape index: {}]
  %s1 = inlined_call_operand.vmem [shape: bf16[4,128,128], index: 1, kind: input, shape index: {}]
  %s2 = inlined_call_operand.vmem [shape: f32[16,128], index: 2, kind: output, shape index: {}]
  %s3 = sld [smem:[#allocation0]]
  $region18: #{compgcn_aug_p_forward.1} parent=0
    _
  %s5 = ssub.s32 1, %s3
  %s6 = scalar_select 0, %s5, %s3
  // Predicated region
  $region2: #{compgcn_aug_p_forward.1} parent=0 // pred_check
    _
  $region3: #{compgcn_aug_p_forward.1} parent=0 // pred_check_branch
    %8 = sbr.rel (0) target = $region5
  $region4: #{compgcn_aug_p_forward.1} parent=0 // pred_region
    _
  $region5: #{compgcn_aug_p_forward.1} parent=0 // pred_fallthru
    _
  // Predicated region
  $region6: #{compgcn_aug_p_forward.1} parent=0 // pred_check
    _
  $region7: #{compgcn_aug_p_forward.1} parent=0 // pred_check_branch
    %10 = sbr.rel (0) target = $region9
  $region8: #{compgcn_aug_p_forward.1} parent=0 // pred_region
    _
  $region9: #{compgcn_aug_p_forward.1} parent=0 // pred_fallthru
    _
  %v12 = vlaneseq
  %v13 = vshrl.u32 %v12, 7
  %v14 = vadd.s32 %v13, 8
  %v15 = vadd.s32 %v13, 16
  %v16 = vadd.s32 %v13, 24
  %v17 = vadd.s32 %v13, 32
  %v18 = vadd.s32 %v13, 40
  %v19 = vadd.s32 %v13, 48
  %v20 = vadd.s32 %v13, 56
  %v21 = vadd.s32 %v13, 64
  %v22 = vadd.s32 %v13, 72
  %v23 = vadd.s32 %v13, 80
  %v24 = vadd.s32 %v13, 88
  %v25 = vadd.s32 %v13, 96
  %v26 = vadd.s32 %v13, 104
  %v27 = vadd.s32 %v13, 112
  %v28 = vadd.s32 %v13, 120
  %v29 = vlaneseq
  %v30 = vand.u32 %v29, 127
  %vm31 = vcmp.lt.s32.totalorder %v13, 16
  %vm32 = vcmp.lt.s32.totalorder %v14, 16
  %vm33 = vcmp.lt.s32.totalorder %v15, 16
  %vm34 = vcmp.lt.s32.totalorder %v16, 16
  %vm35 = vcmp.lt.s32.totalorder %v17, 16
  %vm36 = vcmp.lt.s32.totalorder %v18, 16
  %vm37 = vcmp.lt.s32.totalorder %v19, 16
  %vm38 = vcmp.lt.s32.totalorder %v20, 16
  %vm39 = vcmp.lt.s32.totalorder %v21, 16
  %vm40 = vcmp.lt.s32.totalorder %v22, 16
  %vm41 = vcmp.lt.s32.totalorder %v23, 16
  %vm42 = vcmp.lt.s32.totalorder %v24, 16
  %vm43 = vcmp.lt.s32.totalorder %v25, 16
  %vm44 = vcmp.lt.s32.totalorder %v26, 16
  %vm45 = vcmp.lt.s32.totalorder %v27, 16
  %vm46 = vcmp.lt.s32.totalorder %v28, 16
  %vm47 = vcmp.ge.s32.totalorder %v13, 16
  %vm48 = vcmp.ge.s32.totalorder %v14, 16
  %vm49 = vcmp.ge.s32.totalorder %v15, 16
  %vm50 = vcmp.ge.s32.totalorder %v16, 16
  %vm51 = vcmp.ge.s32.totalorder %v17, 16
  %vm52 = vcmp.ge.s32.totalorder %v18, 16
  %vm53 = vcmp.ge.s32.totalorder %v19, 16
  %vm54 = vcmp.ge.s32.totalorder %v20, 16
  %vm55 = vcmp.ge.s32.totalorder %v21, 16
  %vm56 = vcmp.ge.s32.totalorder %v22, 16
  %vm57 = vcmp.ge.s32.totalorder %v23, 16
  %vm58 = vcmp.ge.s32.totalorder %v24, 16
  %vm59 = vcmp.ge.s32.totalorder %v25, 16
  %vm60 = vcmp.ge.s32.totalorder %v26, 16
  %vm61 = vcmp.ge.s32.totalorder %v27, 16
  %vm62 = vcmp.ge.s32.totalorder %v28, 16
  %vm63 = vcmp.lt.s32.totalorder %v13, 40
  %vm64 = vcmp.lt.s32.totalorder %v14, 40
  %vm65 = vcmp.lt.s32.totalorder %v15, 40
  %vm66 = vcmp.lt.s32.totalorder %v16, 40
  %vm67 = vcmp.lt.s32.totalorder %v17, 40
  %vm68 = vcmp.lt.s32.totalorder %v18, 40
  %vm69 = vcmp.lt.s32.totalorder %v19, 40
  %vm70 = vcmp.lt.s32.totalorder %v20, 40
  %vm71 = vcmp.lt.s32.totalorder %v21, 40
  %vm72 = vcmp.lt.s32.totalorder %v22, 40
  %vm73 = vcmp.lt.s32.totalorder %v23, 40
  %vm74 = vcmp.lt.s32.totalorder %v24, 40
  %vm75 = vcmp.lt.s32.totalorder %v25, 40
  %vm76 = vcmp.lt.s32.totalorder %v26, 40
  %vm77 = vcmp.lt.s32.totalorder %v27, 40
  %vm78 = vcmp.lt.s32.totalorder %v28, 40
  %vm79 = vmand %vm47, %vm63
  %vm80 = vmand %vm48, %vm64
  %vm81 = vmand %vm49, %vm65
  %vm82 = vmand %vm50, %vm66
  %vm83 = vmand %vm51, %vm67
  %vm84 = vmand %vm52, %vm68
  %vm85 = vmand %vm53, %vm69
  %vm86 = vmand %vm54, %vm70
  %vm87 = vmand %vm55, %vm71
  %vm88 = vmand %vm56, %vm72
  %vm89 = vmand %vm57, %vm73
  %vm90 = vmand %vm58, %vm74
  %vm91 = vmand %vm59, %vm75
  %vm92 = vmand %vm60, %vm76
  %vm93 = vmand %vm61, %vm77
  %vm94 = vmand %vm62, %vm78
  %vm95 = vcmp.eq.s32.totalorder %v30, 80
  %vm96 = vmand %vm31, %vm95
  %vm97 = vmand %vm32, %vm95
  %vm98 = vmand %vm33, %vm95
  %vm99 = vmand %vm34, %vm95
  %vm100 = vmand %vm35, %vm95
  %vm101 = vmand %vm36, %vm95
  %vm102 = vmand %vm37, %vm95
  %vm103 = vmand %vm38, %vm95
  %vm104 = vmand %vm39, %vm95
  %vm105 = vmand %vm40, %vm95
  %vm106 = vmand %vm41, %vm95
  %vm107 = vmand %vm42, %vm95
  %vm108 = vmand %vm43, %vm95
  %vm109 = vmand %vm44, %vm95
  %vm110 = vmand %vm45, %vm95
  %vm111 = vmand %vm46, %vm95
  %vm112 = vcmp.eq.s32.totalorder %v30, 81
  %vm113 = vmand %vm79, %vm112
  %vm114 = vmand %vm80, %vm112
  %vm115 = vmand %vm81, %vm112
  %vm116 = vmand %vm82, %vm112
  %vm117 = vmand %vm83, %vm112
  %vm118 = vmand %vm84, %vm112
  %vm119 = vmand %vm85, %vm112
  %vm120 = vmand %vm86, %vm112
  %vm121 = vmand %vm87, %vm112
  %vm122 = vmand %vm88, %vm112
  %vm123 = vmand %vm89, %vm112
  %vm124 = vmand %vm90, %vm112
  %vm125 = vmand %vm91, %vm112
  %vm126 = vmand %vm92, %vm112
  %vm127 = vmand %vm93, %vm112
  %vm128 = vmand %vm94, %vm112
  %vm129 = vmor %vm96, %vm113
  %vm130 = vmor %vm97, %vm114
  %vm131 = vmor %vm98, %vm115
  %vm132 = vmor %vm99, %vm116
  %vm133 = vmor %vm100, %vm117
  %vm134 = vmor %vm101, %vm118
  %vm135 = vmor %vm102, %vm119
  %vm136 = vmor %vm103, %vm120
  %vm137 = vmor %vm104, %vm121
  %vm138 = vmor %vm105, %vm122
  %vm139 = vmor %vm106, %vm123
  %vm140 = vmor %vm107, %vm124
  %vm141 = vmor %vm108, %vm125
  %vm142 = vmor %vm109, %vm126
  %vm143 = vmor %vm110, %vm127
  %vm144 = vmor %vm111, %vm128
  %v145 = vsel %vm129, 1.0, 0.0
  %v146 = vsel %vm130, 1.0, 0.0
  %v147 = vsel %vm131, 1.0, 0.0
  %v148 = vsel %vm132, 1.0, 0.0
  %v149 = vsel %vm133, 1.0, 0.0
  %v150 = vsel %vm134, 1.0, 0.0
  %v151 = vsel %vm135, 1.0, 0.0
  %v152 = vsel %vm136, 1.0, 0.0
  %v153 = vsel %vm137, 1.0, 0.0
  %v154 = vsel %vm138, 1.0, 0.0
  %v155 = vsel %vm139, 1.0, 0.0
  %v156 = vsel %vm140, 1.0, 0.0
  %v157 = vsel %vm141, 1.0, 0.0
  %v158 = vsel %vm142, 1.0, 0.0
  %v159 = vsel %vm143, 1.0, 0.0
  %v160 = vsel %vm144, 1.0, 0.0
  %v161 = vld [vmem:[%s1] sm:$0xf]
  %v162 = vld [vmem:[%s1 + $0x4] sm:$0xf]
  %v163 = vld [vmem:[%s1 + $0x8] sm:$0xf]
  %v164 = vld [vmem:[%s1 + $0xc] sm:$0xf]
  %v165 = vld [vmem:[%s1 + $0x10] sm:$0xf]
  %v166 = vld [vmem:[%s1 + $0x14] sm:$0xf]
  %v167 = vld [vmem:[%s1 + $0x18] sm:$0xf]
  %v168 = vld [vmem:[%s1 + $0x1c] sm:$0xf]
  %v169 = vld [vmem:[%s1 + $0x20] sm:$0xf]
  %v170 = vld [vmem:[%s1 + $0x24] sm:$0xf]
  %v171 = vld [vmem:[%s1 + $0x28] sm:$0xf]
  %v172 = vld [vmem:[%s1 + $0x2c] sm:$0xf]
  %v173 = vld [vmem:[%s1 + $0x30] sm:$0xf]
  %v174 = vld [vmem:[%s1 + $0x34] sm:$0xf]
  %v175 = vld [vmem:[%s1 + $0x38] sm:$0xf]
  %v176 = vld [vmem:[%s1 + $0x3c] sm:$0xf]
  %v177 = vld [vmem:[%s0] sm:$0xf]
  %v178 = vld [vmem:[%s0 + $0x4] sm:$0xf]
  %v179 = vld [vmem:[%s0 + $0x8] sm:$0xf]
  %v180 = vld [vmem:[%s0 + $0xc] sm:$0xf]
  %v181 = vld [vmem:[%s0 + $0x10] sm:$0xf]
  %v182 = vld [vmem:[%s0 + $0x14] sm:$0xf]
  %v183 = vld [vmem:[%s0 + $0x18] sm:$0xf]
  %v184 = vld [vmem:[%s0 + $0x1c] sm:$0xf]
  %v185 = vld [vmem:[%s0 + $0x20] sm:$0xf]
  %v186 = vld [vmem:[%s0 + $0x24] sm:$0xf]
  %v187 = vld [vmem:[%s0 + $0x28] sm:$0xf]
  %v188 = vld [vmem:[%s0 + $0x2c] sm:$0xf]
  %v189 = vld [vmem:[%s0 + $0x30] sm:$0xf]
  %v190 = vld [vmem:[%s0 + $0x34] sm:$0xf]
  %v191 = vld [vmem:[%s0 + $0x38] sm:$0xf]
  %v192 = vld [vmem:[%s0 + $0x3c] sm:$0xf]
  %s193 = scalar_lea.vmem %s1, 64
  %v194 = vld [vmem:[%s193] sm:$0xf]
  %v195 = vld [vmem:[%s193 + $0x4] sm:$0xf]
  %v196 = vld [vmem:[%s193 + $0x8] sm:$0xf]
  %v197 = vld [vmem:[%s193 + $0xc] sm:$0xf]
  %v198 = vld [vmem:[%s193 + $0x10] sm:$0xf]
  %v199 = vld [vmem:[%s193 + $0x14] sm:$0xf]
  %v200 = vld [vmem:[%s193 + $0x18] sm:$0xf]
  %v201 = vld [vmem:[%s193 + $0x1c] sm:$0xf]
  %v202 = vld [vmem:[%s193 + $0x20] sm:$0xf]
  %v203 = vld [vmem:[%s193 + $0x24] sm:$0xf]
  %v204 = vld [vmem:[%s193 + $0x28] sm:$0xf]
  %v205 = vld [vmem:[%s193 + $0x2c] sm:$0xf]
  %v206 = vld [vmem:[%s193 + $0x30] sm:$0xf]
  %v207 = vld [vmem:[%s193 + $0x34] sm:$0xf]
  %v208 = vld [vmem:[%s193 + $0x38] sm:$0xf]
  %v209 = vld [vmem:[%s193 + $0x3c] sm:$0xf]
  %v226 = vunpack.c.l.b16 %v161
  %v227 = vunpack.c.l.b16 %v162
  %v228 = vunpack.c.l.b16 %v163
  %v229 = vunpack.c.l.b16 %v164
  %v230 = vunpack.c.l.b16 %v165
  %v231 = vunpack.c.l.b16 %v166
  %v232 = vunpack.c.l.b16 %v167
  %v233 = vunpack.c.l.b16 %v168
  %v234 = vunpack.c.l.b16 %v169
  %v235 = vunpack.c.l.b16 %v170
  %v236 = vunpack.c.l.b16 %v171
  %v237 = vunpack.c.l.b16 %v172
  %v238 = vunpack.c.l.b16 %v173
  %v239 = vunpack.c.l.b16 %v174
  %v240 = vunpack.c.l.b16 %v175
  %v241 = vunpack.c.l.b16 %v176
  %v242 = vpack.c.b16 %v227, %v226
  %v243 = vpack.c.b16 %v229, %v228
  %v244 = vpack.c.b16 %v231, %v230
  %v245 = vpack.c.b16 %v233, %v232
  %v246 = vpack.c.b16 %v235, %v234
  %v247 = vpack.c.b16 %v237, %v236
  %v248 = vpack.c.b16 %v239, %v238
  %v249 = vpack.c.b16 %v241, %v240
  %v274 = vunpack.c.l.b16 %v177
  %v275 = vunpack.c.l.b16 %v178
  %v276 = vunpack.c.l.b16 %v179
  %v277 = vunpack.c.l.b16 %v180
  %v278 = vunpack.c.l.b16 %v181
  %v279 = vunpack.c.l.b16 %v182
  %v280 = vunpack.c.l.b16 %v183
  %v281 = vunpack.c.l.b16 %v184
  %v282 = vunpack.c.l.b16 %v185
  %v283 = vunpack.c.l.b16 %v186
  %v284 = vunpack.c.l.b16 %v187
  %v285 = vunpack.c.l.b16 %v188
  %v286 = vunpack.c.l.b16 %v189
  %v287 = vunpack.c.l.b16 %v190
  %v288 = vunpack.c.l.b16 %v191
  %v289 = vunpack.c.l.b16 %v192
  %v290 = vpack.c.b16 %v275, %v274
  %v291 = vpack.c.b16 %v277, %v276
  %v292 = vpack.c.b16 %v279, %v278
  %v293 = vpack.c.b16 %v281, %v280
  %v294 = vpack.c.b16 %v283, %v282
  %v295 = vpack.c.b16 %v285, %v284
  %v296 = vpack.c.b16 %v287, %v286
  %v297 = vpack.c.b16 %v289, %v288
  %306 = vmatprep.subr.bf16.mxu0 0
  %307 = vmatpush1.bf16.msra.mxu0 %v297
  %308 = vmatprep.subr.bf16.mxu0 0
  %309 = vmatpush1.bf16.msra.mxu0 %v296
  %310 = vmatprep.subr.bf16.mxu0 0
  %311 = vmatpush1.bf16.msra.mxu0 %v295
  %312 = vmatprep.subr.bf16.mxu0 0
  %313 = vmatpush1.bf16.msra.mxu0 %v294
  %314 = vmatprep.subr.bf16.mxu0 0
  %315 = vmatpush1.bf16.msra.mxu0 %v293
  %316 = vmatprep.subr.bf16.mxu0 0
  %317 = vmatpush1.bf16.msra.mxu0 %v292
  %318 = vmatprep.subr.bf16.mxu0 0
  %319 = vmatpush1.bf16.msra.mxu0 %v291
  %320 = vmatprep.subr.bf16.mxu0 0
  %321 = vmatpush1.bf16.msra.mxu0 %v290
  %322 = vmatprep.subr.bf16.mxu0 0
  %323 = vmatpush2.bf16.msra.mxu0 0
  %324 = vmatprep.subr.bf16.mxu0 0
  %325 = vmatpush2.bf16.msra.mxu0 0
  %326 = vmatprep.subr.bf16.mxu0 0
  %327 = vmatpush2.bf16.msra.mxu0 0
  %328 = vmatprep.subr.bf16.mxu0 0
  %329 = vmatpush2.bf16.msra.mxu0 0
  %330 = vmatprep.subr.bf16.mxu0 0
  %331 = vmatpush2.bf16.msra.mxu0 0
  %332 = vmatprep.subr.bf16.mxu0 0
  %333 = vmatpush2.bf16.msra.mxu0 0
  %334 = vmatprep.subr.bf16.mxu0 0
  %335 = vmatpush2.bf16.msra.mxu0 0
  %336 = vmatprep.subr.bf16.mxu0 0
  %337 = vmatpush2.bf16.msra.mxu0 0
  %338 = vmatprep.mubr.bf16.mxu0 0
  %339 = vmatmul.mubr.bf16.gmra.mxu0 %v242
  %v340 = vpop.f32.mrf.mxu0
  %v341 = vadd.f32 0.0, %v340
  %v342 = vpop.f32.mrf.mxu0
  %v343 = vpop.f32.mrf.mxu0
  %v344 = vadd.f32 0.0, %v343
  %v345 = vpop.f32.mrf.mxu0
  %346 = vmatprep.mubr.bf16.mxu0 0
  %347 = vmatmul.mubr.bf16.gmra.mxu0 %v243
  %v348 = vpop.f32.mrf.mxu0
  %v349 = vadd.f32 0.0, %v348
  %v350 = vpop.f32.mrf.mxu0
  %v351 = vpop.f32.mrf.mxu0
  %v352 = vadd.f32 0.0, %v351
  %v353 = vpop.f32.mrf.mxu0
  %354 = vmatprep.mubr.bf16.mxu0 0
  %355 = vmatmul.mubr.bf16.gmra.mxu0 %v244
  %v356 = vpop.f32.mrf.mxu0
  %v357 = vadd.f32 0.0, %v356
  %v358 = vpop.f32.mrf.mxu0
  %v359 = vpop.f32.mrf.mxu0
  %v360 = vadd.f32 0.0, %v359
  %v361 = vpop.f32.mrf.mxu0
  %362 = vmatprep.mubr.bf16.mxu0 0
  %363 = vmatmul.mubr.bf16.gmra.mxu0 %v245
  %v364 = vpop.f32.mrf.mxu0
  %v365 = vadd.f32 0.0, %v364
  %v366 = vpop.f32.mrf.mxu0
  %v367 = vpop.f32.mrf.mxu0
  %v368 = vadd.f32 0.0, %v367
  %v369 = vpop.f32.mrf.mxu0
  %370 = vmatprep.mubr.bf16.mxu0 0
  %371 = vmatmul.mubr.bf16.gmra.mxu0 %v246
  %v372 = vpop.f32.mrf.mxu0
  %v373 = vadd.f32 0.0, %v372
  %v374 = vpop.f32.mrf.mxu0
  %v375 = vpop.f32.mrf.mxu0
  %v376 = vadd.f32 0.0, %v375
  %v377 = vpop.f32.mrf.mxu0
  %378 = vmatprep.mubr.bf16.mxu0 0
  %379 = vmatmul.mubr.bf16.gmra.mxu0 %v247
  %v380 = vpop.f32.mrf.mxu0
  %v381 = vadd.f32 0.0, %v380
  %v382 = vpop.f32.mrf.mxu0
  %v383 = vpop.f32.mrf.mxu0
  %v384 = vadd.f32 0.0, %v383
  %v385 = vpop.f32.mrf.mxu0
  %386 = vmatprep.mubr.bf16.mxu0 0
  %387 = vmatmul.mubr.bf16.gmra.mxu0 %v248
  %v388 = vpop.f32.mrf.mxu0
  %v389 = vadd.f32 0.0, %v388
  %v390 = vpop.f32.mrf.mxu0
  %v391 = vpop.f32.mrf.mxu0
  %v392 = vadd.f32 0.0, %v391
  %v393 = vpop.f32.mrf.mxu0
  %394 = vmatprep.mubr.bf16.mxu0 0
  %395 = vmatmul.mubr.bf16.gmra.mxu0 %v249
  %v396 = vpop.f32.mrf.mxu0
  %v397 = vadd.f32 0.0, %v396
  %v398 = vpop.f32.mrf.mxu0
  %v399 = vpop.f32.mrf.mxu0
  %v400 = vadd.f32 0.0, %v399
  %v401 = vpop.f32.mrf.mxu0
  %402 = vdwg.mxu0
  %v403 = vpack.c.bf16 %v344, %v341
  %v404 = vpack.c.bf16 %v352, %v349
  %v405 = vpack.c.bf16 %v360, %v357
  %v406 = vpack.c.bf16 %v368, %v365
  %v407 = vpack.c.bf16 %v376, %v373
  %v408 = vpack.c.bf16 %v384, %v381
  %v409 = vpack.c.bf16 %v392, %v389
  %v410 = vpack.c.bf16 %v400, %v397
  %v427 = vunpack.c.l.b16 %v194
  %v428 = vunpack.c.l.b16 %v195
  %v429 = vunpack.c.l.b16 %v196
  %v430 = vunpack.c.l.b16 %v197
  %v431 = vunpack.c.l.b16 %v198
  %v432 = vunpack.c.l.b16 %v199
  %v433 = vunpack.c.l.b16 %v200
  %v434 = vunpack.c.l.b16 %v201
  %v435 = vunpack.c.l.b16 %v202
  %v436 = vunpack.c.l.b16 %v203
  %v437 = vunpack.c.l.b16 %v204
  %v438 = vunpack.c.l.b16 %v205
  %v439 = vunpack.c.l.b16 %v206
  %v440 = vunpack.c.l.b16 %v207
  %v441 = vunpack.c.l.b16 %v208
  %v442 = vunpack.c.l.b16 %v209
  %v443 = vpack.c.b16 %v428, %v427
  %v444 = vpack.c.b16 %v430, %v429
  %v445 = vpack.c.b16 %v432, %v431
  %v446 = vpack.c.b16 %v434, %v433
  %v447 = vpack.c.b16 %v436, %v435
  %v448 = vpack.c.b16 %v438, %v437
  %v449 = vpack.c.b16 %v440, %v439
  %v450 = vpack.c.b16 %v442, %v441
  %459 = vmatprep.subr.bf16.mxu0 0
  %460 = vmatpush1.bf16.msra.mxu0 %v410
  %461 = vmatprep.subr.bf16.mxu0 0
  %462 = vmatpush1.bf16.msra.mxu0 %v409
  %463 = vmatprep.subr.bf16.mxu0 0
  %464 = vmatpush1.bf16.msra.mxu0 %v408
  %465 = vmatprep.subr.bf16.mxu0 0
  %466 = vmatpush1.bf16.msra.mxu0 %v407
  %467 = vmatprep.subr.bf16.mxu0 0
  %468 = vmatpush1.bf16.msra.mxu0 %v406
  %469 = vmatprep.subr.bf16.mxu0 0
  %470 = vmatpush1.bf16.msra.mxu0 %v405
  %471 = vmatprep.subr.bf16.mxu0 0
  %472 = vmatpush1.bf16.msra.mxu0 %v404
  %473 = vmatprep.subr.bf16.mxu0 0
  %474 = vmatpush1.bf16.msra.mxu0 %v403
  %475 = vmatprep.subr.bf16.mxu0 0
  %476 = vmatpush2.bf16.msra.mxu0 0
  %477 = vmatprep.subr.bf16.mxu0 0
  %478 = vmatpush2.bf16.msra.mxu0 0
  %479 = vmatprep.subr.bf16.mxu0 0
  %480 = vmatpush2.bf16.msra.mxu0 0
  %481 = vmatprep.subr.bf16.mxu0 0
  %482 = vmatpush2.bf16.msra.mxu0 0
  %483 = vmatprep.subr.bf16.mxu0 0
  %484 = vmatpush2.bf16.msra.mxu0 0
  %485 = vmatprep.subr.bf16.mxu0 0
  %486 = vmatpush2.bf16.msra.mxu0 0
  %487 = vmatprep.subr.bf16.mxu0 0
  %488 = vmatpush2.bf16.msra.mxu0 0
  %489 = vmatprep.subr.bf16.mxu0 0
  %490 = vmatpush2.bf16.msra.mxu0 0
  %491 = vmatprep.mubr.bf16.mxu0 0
  %492 = vmatmul.mubr.bf16.gmra.mxu0 %v443
  %v493 = vpop.f32.mrf.mxu0
  %v494 = vadd.f32 0.0, %v493
  %v495 = vpop.f32.mrf.mxu0
  %v496 = vpop.f32.mrf.mxu0
  %v497 = vadd.f32 0.0, %v496
  %v498 = vpop.f32.mrf.mxu0
  %499 = vmatprep.mubr.bf16.mxu0 0
  %500 = vmatmul.mubr.bf16.gmra.mxu0 %v444
  %v501 = vpop.f32.mrf.mxu0
  %v502 = vadd.f32 0.0, %v501
  %v503 = vpop.f32.mrf.mxu0
  %v504 = vpop.f32.mrf.mxu0
  %v505 = vadd.f32 0.0, %v504
  %v506 = vpop.f32.mrf.mxu0
  %507 = vmatprep.mubr.bf16.mxu0 0
  %508 = vmatmul.mubr.bf16.gmra.mxu0 %v445
  %v509 = vpop.f32.mrf.mxu0
  %v510 = vadd.f32 0.0, %v509
  %v511 = vpop.f32.mrf.mxu0
  %v512 = vpop.f32.mrf.mxu0
  %v513 = vadd.f32 0.0, %v512
  %v514 = vpop.f32.mrf.mxu0
  %515 = vmatprep.mubr.bf16.mxu0 0
  %516 = vmatmul.mubr.bf16.gmra.mxu0 %v446
  %v517 = vpop.f32.mrf.mxu0
  %v518 = vadd.f32 0.0, %v517
  %v519 = vpop.f32.mrf.mxu0
  %v520 = vpop.f32.mrf.mxu0
  %v521 = vadd.f32 0.0, %v520
  %v522 = vpop.f32.mrf.mxu0
  %523 = vmatprep.mubr.bf16.mxu0 0
  %524 = vmatmul.mubr.bf16.gmra.mxu0 %v447
  %v525 = vpop.f32.mrf.mxu0
  %v526 = vadd.f32 0.0, %v525
  %v527 = vpop.f32.mrf.mxu0
  %v528 = vpop.f32.mrf.mxu0
  %v529 = vadd.f32 0.0, %v528
  %v530 = vpop.f32.mrf.mxu0
  %531 = vmatprep.mubr.bf16.mxu0 0
  %532 = vmatmul.mubr.bf16.gmra.mxu0 %v448
  %v533 = vpop.f32.mrf.mxu0
  %v534 = vadd.f32 0.0, %v533
  %v535 = vpop.f32.mrf.mxu0
  %v536 = vpop.f32.mrf.mxu0
  %v537 = vadd.f32 0.0, %v536
  %v538 = vpop.f32.mrf.mxu0
  %539 = vmatprep.mubr.bf16.mxu0 0
  %540 = vmatmul.mubr.bf16.gmra.mxu0 %v449
  %v541 = vpop.f32.mrf.mxu0
  %v542 = vadd.f32 0.0, %v541
  %v543 = vpop.f32.mrf.mxu0
  %v544 = vpop.f32.mrf.mxu0
  %v545 = vadd.f32 0.0, %v544
  %v546 = vpop.f32.mrf.mxu0
  %547 = vmatprep.mubr.bf16.mxu0 0
  %548 = vmatmul.mubr.bf16.gmra.mxu0 %v450
  %v549 = vpop.f32.mrf.mxu0
  %v550 = vadd.f32 0.0, %v549
  %v551 = vpop.f32.mrf.mxu0
  %v552 = vpop.f32.mrf.mxu0
  %v553 = vadd.f32 0.0, %v552
  %v554 = vpop.f32.mrf.mxu0
  %555 = vdwg.mxu0
  %v556 = vadd.f32 %v341, %v494
  %v557 = vadd.f32 %v344, %v497
  %v558 = vadd.f32 %v349, %v502
  %v559 = vadd.f32 %v352, %v505
  %v560 = vadd.f32 %v357, %v510
  %v561 = vadd.f32 %v360, %v513
  %v562 = vadd.f32 %v365, %v518
  %v563 = vadd.f32 %v368, %v521
  %v564 = vadd.f32 %v373, %v526
  %v565 = vadd.f32 %v376, %v529
  %v566 = vadd.f32 %v381, %v534
  %v567 = vadd.f32 %v384, %v537
  %v568 = vadd.f32 %v389, %v542
  %v569 = vadd.f32 %v392, %v545
  %v570 = vadd.f32 %v397, %v550
  %v571 = vadd.f32 %v400, %v553
  %v572 = vmax.f32 %v556, 0.0
  %v573 = vmax.f32 %v557, 0.0
  %v574 = vmax.f32 %v558, 0.0
  %v575 = vmax.f32 %v559, 0.0
  %v576 = vmax.f32 %v560, 0.0
  %v577 = vmax.f32 %v561, 0.0
  %v578 = vmax.f32 %v562, 0.0
  %v579 = vmax.f32 %v563, 0.0
  %v580 = vmax.f32 %v564, 0.0
  %v581 = vmax.f32 %v565, 0.0
  %v582 = vmax.f32 %v566, 0.0
  %v583 = vmax.f32 %v567, 0.0
  %v584 = vmax.f32 %v568, 0.0
  %v585 = vmax.f32 %v569, 0.0
  %v586 = vmax.f32 %v570, 0.0
  %v587 = vmax.f32 %v571, 0.0
  %vm588 = vcmp.lt.s32.totalorder %v30, 32
  %vm589 = vmand %vm31, %vm588
  %vm590 = vmand %vm32, %vm588
  %vm591 = vmand %vm33, %vm588
  %vm592 = vmand %vm34, %vm588
  %vm593 = vmand %vm35, %vm588
  %vm594 = vmand %vm36, %vm588
  %vm595 = vmand %vm37, %vm588
  %vm596 = vmand %vm38, %vm588
  %vm597 = vmand %vm39, %vm588
  %vm598 = vmand %vm40, %vm588
  %vm599 = vmand %vm41, %vm588
  %vm600 = vmand %vm42, %vm588
  %vm601 = vmand %vm43, %vm588
  %vm602 = vmand %vm44, %vm588
  %vm603 = vmand %vm45, %vm588
  %vm604 = vmand %vm46, %vm588
  %vm605 = vcmp.ge.s32.totalorder %v30, 40
  %vm606 = vmand %vm79, %vm605
  %vm607 = vmand %vm80, %vm605
  %vm608 = vmand %vm81, %vm605
  %vm609 = vmand %vm82, %vm605
  %vm610 = vmand %vm83, %vm605
  %vm611 = vmand %vm84, %vm605
  %vm612 = vmand %vm85, %vm605
  %vm613 = vmand %vm86, %vm605
  %vm614 = vmand %vm87, %vm605
  %vm615 = vmand %vm88, %vm605
  %vm616 = vmand %vm89, %vm605
  %vm617 = vmand %vm90, %vm605
  %vm618 = vmand %vm91, %vm605
  %vm619 = vmand %vm92, %vm605
  %vm620 = vmand %vm93, %vm605
  %vm621 = vmand %vm94, %vm605
  %vm622 = vcmp.lt.s32.totalorder %v30, 72
  %vm623 = vmand %vm606, %vm622
  %vm624 = vmand %vm607, %vm622
  %vm625 = vmand %vm608, %vm622
  %vm626 = vmand %vm609, %vm622
  %vm627 = vmand %vm610, %vm622
  %vm628 = vmand %vm611, %vm622
  %vm629 = vmand %vm612, %vm622
  %vm630 = vmand %vm613, %vm622
  %vm631 = vmand %vm614, %vm622
  %vm632 = vmand %vm615, %vm622
  %vm633 = vmand %vm616, %vm622
  %vm634 = vmand %vm617, %vm622
  %vm635 = vmand %vm618, %vm622
  %vm636 = vmand %vm619, %vm622
  %vm637 = vmand %vm620, %vm622
  %vm638 = vmand %vm621, %vm622
  %vm639 = vmor %vm589, %vm623
  %vm640 = vmor %vm590, %vm624
  %vm641 = vmor %vm591, %vm625
  %vm642 = vmor %vm592, %vm626
  %vm643 = vmor %vm593, %vm627
  %vm644 = vmor %vm594, %vm628
  %vm645 = vmor %vm595, %vm629
  %vm646 = vmor %vm596, %vm630
  %vm647 = vmor %vm597, %vm631
  %vm648 = vmor %vm598, %vm632
  %vm649 = vmor %vm599, %vm633
  %vm650 = vmor %vm600, %vm634
  %vm651 = vmor %vm601, %vm635
  %vm652 = vmor %vm602, %vm636
  %vm653 = vmor %vm603, %vm637
  %vm654 = vmor %vm604, %vm638
  %v655 = vsel %vm639, %v572, 0.0
  %v656 = vsel %vm640, %v573, 0.0
  %v657 = vsel %vm641, %v574, 0.0
  %v658 = vsel %vm642, %v575, 0.0
  %v659 = vsel %vm643, %v576, 0.0
  %v660 = vsel %vm644, %v577, 0.0
  %v661 = vsel %vm645, %v578, 0.0
  %v662 = vsel %vm646, %v579, 0.0
  %v663 = vsel %vm647, %v580, 0.0
  %v664 = vsel %vm648, %v581, 0.0
  %v665 = vsel %vm649, %v582, 0.0
  %v666 = vsel %vm650, %v583, 0.0
  %v667 = vsel %vm651, %v584, 0.0
  %v668 = vsel %vm652, %v585, 0.0
  %v669 = vsel %vm653, %v586, 0.0
  %v670 = vsel %vm654, %v587, 0.0
  %v671 = vadd.f32 %v655, %v145
  %v672 = vadd.f32 %v656, %v146
  %v673 = vadd.f32 %v657, %v147
  %v674 = vadd.f32 %v658, %v148
  %v675 = vadd.f32 %v659, %v149
  %v676 = vadd.f32 %v660, %v150
  %v677 = vadd.f32 %v661, %v151
  %v678 = vadd.f32 %v662, %v152
  %v679 = vadd.f32 %v663, %v153
  %v680 = vadd.f32 %v664, %v154
  %v681 = vadd.f32 %v665, %v155
  %v682 = vadd.f32 %v666, %v156
  %v683 = vadd.f32 %v667, %v157
  %v684 = vadd.f32 %v668, %v158
  %v685 = vadd.f32 %v669, %v159
  %v686 = vadd.f32 %v670, %v160
  %s687 = scalar_lea.vmem %s0, 64
  %v688 = vld [vmem:[%s687] sm:$0xf]
  %v689 = vld [vmem:[%s687 + $0x4] sm:$0xf]
  %v690 = vld [vmem:[%s687 + $0x8] sm:$0xf]
  %v691 = vld [vmem:[%s687 + $0xc] sm:$0xf]
  %v692 = vld [vmem:[%s687 + $0x10] sm:$0xf]
  %v693 = vld [vmem:[%s687 + $0x14] sm:$0xf]
  %v694 = vld [vmem:[%s687 + $0x18] sm:$0xf]
  %v695 = vld [vmem:[%s687 + $0x1c] sm:$0xf]
  %v696 = vld [vmem:[%s687 + $0x20] sm:$0xf]
  %v697 = vld [vmem:[%s687 + $0x24] sm:$0xf]
  %v698 = vld [vmem:[%s687 + $0x28] sm:$0xf]
  %v699 = vld [vmem:[%s687 + $0x2c] sm:$0xf]
  %v700 = vld [vmem:[%s687 + $0x30] sm:$0xf]
  %v701 = vld [vmem:[%s687 + $0x34] sm:$0xf]
  %v702 = vld [vmem:[%s687 + $0x38] sm:$0xf]
  %v703 = vld [vmem:[%s687 + $0x3c] sm:$0xf]
  %v704 = vpack.c.bf16 %v672, %v671
  %v705 = vpack.c.bf16 %v674, %v673
  %v706 = vpack.c.bf16 %v676, %v675
  %v707 = vpack.c.bf16 %v678, %v677
  %v708 = vpack.c.bf16 %v680, %v679
  %v709 = vpack.c.bf16 %v682, %v681
  %v710 = vpack.c.bf16 %v684, %v683
  %v711 = vpack.c.bf16 %v686, %v685
  %v728 = vunpack.c.l.b16 %v688
  %v729 = vunpack.c.l.b16 %v689
  %v730 = vunpack.c.l.b16 %v690
  %v731 = vunpack.c.l.b16 %v691
  %v732 = vunpack.c.l.b16 %v692
  %v733 = vunpack.c.l.b16 %v693
  %v734 = vunpack.c.l.b16 %v694
  %v735 = vunpack.c.l.b16 %v695
  %v736 = vunpack.c.l.b16 %v696
  %v737 = vunpack.c.l.b16 %v697
  %v738 = vunpack.c.l.b16 %v698
  %v739 = vunpack.c.l.b16 %v699
  %v740 = vunpack.c.l.b16 %v700
  %v741 = vunpack.c.l.b16 %v701
  %v742 = vunpack.c.l.b16 %v702
  %v743 = vunpack.c.l.b16 %v703
  %v744 = vpack.c.b16 %v729, %v728
  %v745 = vpack.c.b16 %v731, %v730
  %v746 = vpack.c.b16 %v733, %v732
  %v747 = vpack.c.b16 %v735, %v734
  %v748 = vpack.c.b16 %v737, %v736
  %v749 = vpack.c.b16 %v739, %v738
  %v750 = vpack.c.b16 %v741, %v740
  %v751 = vpack.c.b16 %v743, %v742
  %760 = vmatprep.subr.bf16.mxu0 0
  %761 = vmatpush1.bf16.msra.mxu0 %v751
  %762 = vmatprep.subr.bf16.mxu0 0
  %763 = vmatpush1.bf16.msra.mxu0 %v750
  %764 = vmatprep.subr.bf16.mxu0 0
  %765 = vmatpush1.bf16.msra.mxu0 %v749
  %766 = vmatprep.subr.bf16.mxu0 0
  %767 = vmatpush1.bf16.msra.mxu0 %v748
  %768 = vmatprep.subr.bf16.mxu0 0
  %769 = vmatpush1.bf16.msra.mxu0 %v747
  %770 = vmatprep.subr.bf16.mxu0 0
  %771 = vmatpush1.bf16.msra.mxu0 %v746
  %772 = vmatprep.subr.bf16.mxu0 0
  %773 = vmatpush1.bf16.msra.mxu0 %v745
  %774 = vmatprep.subr.bf16.mxu0 0
  %775 = vmatpush1.bf16.msra.mxu0 %v744
  %776 = vmatprep.subr.bf16.mxu0 0
  %777 = vmatpush2.bf16.msra.mxu0 0
  %778 = vmatprep.subr.bf16.mxu0 0
  %779 = vmatpush2.bf16.msra.mxu0 0
  %780 = vmatprep.subr.bf16.mxu0 0
  %781 = vmatpush2.bf16.msra.mxu0 0
  %782 = vmatprep.subr.bf16.mxu0 0
  %783 = vmatpush2.bf16.msra.mxu0 0
  %784 = vmatprep.subr.bf16.mxu0 0
  %785 = vmatpush2.bf16.msra.mxu0 0
  %786 = vmatprep.subr.bf16.mxu0 0
  %787 = vmatpush2.bf16.msra.mxu0 0
  %788 = vmatprep.subr.bf16.mxu0 0
  %789 = vmatpush2.bf16.msra.mxu0 0
  %790 = vmatprep.subr.bf16.mxu0 0
  %791 = vmatpush2.bf16.msra.mxu0 0
  %792 = vmatprep.mubr.bf16.mxu0 0
  %793 = vmatmul.mubr.bf16.gmra.mxu0 %v704
  %v794 = vpop.f32.mrf.mxu0
  %v795 = vadd.f32 0.0, %v794
  %v796 = vpop.f32.mrf.mxu0
  %v797 = vpop.f32.mrf.mxu0
  %v798 = vadd.f32 0.0, %v797
  %v799 = vpop.f32.mrf.mxu0
  %800 = vmatprep.mubr.bf16.mxu0 0
  %801 = vmatmul.mubr.bf16.gmra.mxu0 %v705
  %v802 = vpop.f32.mrf.mxu0
  %v803 = vadd.f32 0.0, %v802
  %v804 = vpop.f32.mrf.mxu0
  %v805 = vpop.f32.mrf.mxu0
  %v806 = vadd.f32 0.0, %v805
  %v807 = vpop.f32.mrf.mxu0
  %808 = vmatprep.mubr.bf16.mxu0 0
  %809 = vmatmul.mubr.bf16.gmra.mxu0 %v706
  %v810 = vpop.f32.mrf.mxu0
  %v811 = vadd.f32 0.0, %v810
  %v812 = vpop.f32.mrf.mxu0
  %v813 = vpop.f32.mrf.mxu0
  %v814 = vadd.f32 0.0, %v813
  %v815 = vpop.f32.mrf.mxu0
  %816 = vmatprep.mubr.bf16.mxu0 0
  %817 = vmatmul.mubr.bf16.gmra.mxu0 %v707
  %v818 = vpop.f32.mrf.mxu0
  %v819 = vadd.f32 0.0, %v818
  %v820 = vpop.f32.mrf.mxu0
  %v821 = vpop.f32.mrf.mxu0
  %v822 = vadd.f32 0.0, %v821
  %v823 = vpop.f32.mrf.mxu0
  %824 = vmatprep.mubr.bf16.mxu0 0
  %825 = vmatmul.mubr.bf16.gmra.mxu0 %v708
  %v826 = vpop.f32.mrf.mxu0
  %v827 = vadd.f32 0.0, %v826
  %v828 = vpop.f32.mrf.mxu0
  %v829 = vpop.f32.mrf.mxu0
  %v830 = vadd.f32 0.0, %v829
  %v831 = vpop.f32.mrf.mxu0
  %832 = vmatprep.mubr.bf16.mxu0 0
  %833 = vmatmul.mubr.bf16.gmra.mxu0 %v709
  %v834 = vpop.f32.mrf.mxu0
  %v835 = vadd.f32 0.0, %v834
  %v836 = vpop.f32.mrf.mxu0
  %v837 = vpop.f32.mrf.mxu0
  %v838 = vadd.f32 0.0, %v837
  %v839 = vpop.f32.mrf.mxu0
  %840 = vmatprep.mubr.bf16.mxu0 0
  %841 = vmatmul.mubr.bf16.gmra.mxu0 %v710
  %v842 = vpop.f32.mrf.mxu0
  %v843 = vadd.f32 0.0, %v842
  %v844 = vpop.f32.mrf.mxu0
  %v845 = vpop.f32.mrf.mxu0
  %v846 = vadd.f32 0.0, %v845
  %v847 = vpop.f32.mrf.mxu0
  %848 = vmatprep.mubr.bf16.mxu0 0
  %849 = vmatmul.mubr.bf16.gmra.mxu0 %v711
  %v850 = vpop.f32.mrf.mxu0
  %v851 = vadd.f32 0.0, %v850
  %v852 = vpop.f32.mrf.mxu0
  %v853 = vpop.f32.mrf.mxu0
  %v854 = vadd.f32 0.0, %v853
  %v855 = vpop.f32.mrf.mxu0
  %856 = vdwg.mxu0
  %v857 = vpack.c.bf16 %v798, %v795
  %v858 = vpack.c.bf16 %v806, %v803
  %v859 = vpack.c.bf16 %v814, %v811
  %v860 = vpack.c.bf16 %v822, %v819
  %v861 = vpack.c.bf16 %v830, %v827
  %v862 = vpack.c.bf16 %v838, %v835
  %v863 = vpack.c.bf16 %v846, %v843
  %v864 = vpack.c.bf16 %v854, %v851
  %865 = vmatprep.subr.bf16.mxu0 0
  %866 = vmatpush1.bf16.msra.mxu0 %v864
  %867 = vmatprep.subr.bf16.mxu0 0
  %868 = vmatpush1.bf16.msra.mxu0 %v863
  %869 = vmatprep.subr.bf16.mxu0 0
  %870 = vmatpush1.bf16.msra.mxu0 %v862
  %871 = vmatprep.subr.bf16.mxu0 0
  %872 = vmatpush1.bf16.msra.mxu0 %v861
  %873 = vmatprep.subr.bf16.mxu0 0
  %874 = vmatpush1.bf16.msra.mxu0 %v860
  %875 = vmatprep.subr.bf16.mxu0 0
  %876 = vmatpush1.bf16.msra.mxu0 %v859
  %877 = vmatprep.subr.bf16.mxu0 0
  %878 = vmatpush1.bf16.msra.mxu0 %v858
  %879 = vmatprep.subr.bf16.mxu0 0
  %880 = vmatpush1.bf16.msra.mxu0 %v857
  %881 = vmatprep.subr.bf16.mxu0 0
  %882 = vmatpush2.bf16.msra.mxu0 0
  %883 = vmatprep.subr.bf16.mxu0 0
  %884 = vmatpush2.bf16.msra.mxu0 0
  %885 = vmatprep.subr.bf16.mxu0 0
  %886 = vmatpush2.bf16.msra.mxu0 0
  %887 = vmatprep.subr.bf16.mxu0 0
  %888 = vmatpush2.bf16.msra.mxu0 0
  %889 = vmatprep.subr.bf16.mxu0 0
  %890 = vmatpush2.bf16.msra.mxu0 0
  %891 = vmatprep.subr.bf16.mxu0 0
  %892 = vmatpush2.bf16.msra.mxu0 0
  %893 = vmatprep.subr.bf16.mxu0 0
  %894 = vmatpush2.bf16.msra.mxu0 0
  %895 = vmatprep.subr.bf16.mxu0 0
  %896 = vmatpush2.bf16.msra.mxu0 0
  %897 = vmatprep.mubr.bf16.mxu0 0
  %898 = vmatmul.mubr.bf16.gmra.mxu0 %v443
  %v899 = vpop.f32.mrf.mxu0
  %v900 = vadd.f32 0.0, %v899
  %v901 = vpop.f32.mrf.mxu0
  %v902 = vpop.f32.mrf.mxu0
  %v903 = vadd.f32 0.0, %v902
  %v904 = vpop.f32.mrf.mxu0
  %905 = vmatprep.mubr.bf16.mxu0 0
  %906 = vmatmul.mubr.bf16.gmra.mxu0 %v444
  %v907 = vpop.f32.mrf.mxu0
  %v908 = vadd.f32 0.0, %v907
  %v909 = vpop.f32.mrf.mxu0
  %v910 = vpop.f32.mrf.mxu0
  %v911 = vadd.f32 0.0, %v910
  %v912 = vpop.f32.mrf.mxu0
  %913 = vmatprep.mubr.bf16.mxu0 0
  %914 = vmatmul.mubr.bf16.gmra.mxu0 %v445
  %v915 = vpop.f32.mrf.mxu0
  %v916 = vadd.f32 0.0, %v915
  %v917 = vpop.f32.mrf.mxu0
  %v918 = vpop.f32.mrf.mxu0
  %v919 = vadd.f32 0.0, %v918
  %v920 = vpop.f32.mrf.mxu0
  %921 = vmatprep.mubr.bf16.mxu0 0
  %922 = vmatmul.mubr.bf16.gmra.mxu0 %v446
  %v923 = vpop.f32.mrf.mxu0
  %v924 = vadd.f32 0.0, %v923
  %v925 = vpop.f32.mrf.mxu0
  %v926 = vpop.f32.mrf.mxu0
  %v927 = vadd.f32 0.0, %v926
  %v928 = vpop.f32.mrf.mxu0
  %929 = vmatprep.mubr.bf16.mxu0 0
  %930 = vmatmul.mubr.bf16.gmra.mxu0 %v447
  %v931 = vpop.f32.mrf.mxu0
  %v932 = vadd.f32 0.0, %v931
  %v933 = vpop.f32.mrf.mxu0
  %v934 = vpop.f32.mrf.mxu0
  %v935 = vadd.f32 0.0, %v934
  %v936 = vpop.f32.mrf.mxu0
  %937 = vmatprep.mubr.bf16.mxu0 0
  %938 = vmatmul.mubr.bf16.gmra.mxu0 %v448
  %v939 = vpop.f32.mrf.mxu0
  %v940 = vadd.f32 0.0, %v939
  %v941 = vpop.f32.mrf.mxu0
  %v942 = vpop.f32.mrf.mxu0
  %v943 = vadd.f32 0.0, %v942
  %v944 = vpop.f32.mrf.mxu0
  %945 = vmatprep.mubr.bf16.mxu0 0
  %946 = vmatmul.mubr.bf16.gmra.mxu0 %v449
  %v947 = vpop.f32.mrf.mxu0
  %v948 = vadd.f32 0.0, %v947
  %v949 = vpop.f32.mrf.mxu0
  %v950 = vpop.f32.mrf.mxu0
  %v951 = vadd.f32 0.0, %v950
  %v952 = vpop.f32.mrf.mxu0
  %953 = vmatprep.mubr.bf16.mxu0 0
  %954 = vmatmul.mubr.bf16.gmra.mxu0 %v450
  %v955 = vpop.f32.mrf.mxu0
  %v956 = vadd.f32 0.0, %v955
  %v957 = vpop.f32.mrf.mxu0
  %v958 = vpop.f32.mrf.mxu0
  %v959 = vadd.f32 0.0, %v958
  %v960 = vpop.f32.mrf.mxu0
  %961 = vdwg.mxu0
  %v962 = vadd.f32 %v795, %v900
  %v963 = vadd.f32 %v798, %v903
  %v964 = vadd.f32 %v803, %v908
  %v965 = vadd.f32 %v806, %v911
  %v966 = vadd.f32 %v811, %v916
  %v967 = vadd.f32 %v814, %v919
  %v968 = vadd.f32 %v819, %v924
  %v969 = vadd.f32 %v822, %v927
  %v970 = vadd.f32 %v827, %v932
  %v971 = vadd.f32 %v830, %v935
  %v972 = vadd.f32 %v835, %v940
  %v973 = vadd.f32 %v838, %v943
  %v974 = vadd.f32 %v843, %v948
  %v975 = vadd.f32 %v846, %v951
  %v976 = vadd.f32 %v851, %v956
  %v977 = vadd.f32 %v854, %v959
  %vm978 = vcmp.lt.s32.totalorder %v30, 16
  %vm979 = vmand %vm31, %vm978
  %vm980 = vmand %vm32, %vm978
  %vm981 = vmand %vm33, %vm978
  %vm982 = vmand %vm34, %vm978
  %vm983 = vmand %vm35, %vm978
  %vm984 = vmand %vm36, %vm978
  %vm985 = vmand %vm37, %vm978
  %vm986 = vmand %vm38, %vm978
  %vm987 = vmand %vm39, %vm978
  %vm988 = vmand %vm40, %vm978
  %vm989 = vmand %vm41, %vm978
  %vm990 = vmand %vm42, %vm978
  %vm991 = vmand %vm43, %vm978
  %vm992 = vmand %vm44, %vm978
  %vm993 = vmand %vm45, %vm978
  %vm994 = vmand %vm46, %vm978
  %vm995 = vcmp.lt.s32.totalorder %v30, 56
  %vm996 = vmand %vm606, %vm995
  %vm997 = vmand %vm607, %vm995
  %vm998 = vmand %vm608, %vm995
  %vm999 = vmand %vm609, %vm995
  %vm1000 = vmand %vm610, %vm995
  %vm1001 = vmand %vm611, %vm995
  %vm1002 = vmand %vm612, %vm995
  %vm1003 = vmand %vm613, %vm995
  %vm1004 = vmand %vm614, %vm995
  %vm1005 = vmand %vm615, %vm995
  %vm1006 = vmand %vm616, %vm995
  %vm1007 = vmand %vm617, %vm995
  %vm1008 = vmand %vm618, %vm995
  %vm1009 = vmand %vm619, %vm995
  %vm1010 = vmand %vm620, %vm995
  %vm1011 = vmand %vm621, %vm995
  %vm1012 = vmor %vm979, %vm996
  %vm1013 = vmor %vm980, %vm997
  %vm1014 = vmor %vm981, %vm998
  %vm1015 = vmor %vm982, %vm999
  %vm1016 = vmor %vm983, %vm1000
  %vm1017 = vmor %vm984, %vm1001
  %vm1018 = vmor %vm985, %vm1002
  %vm1019 = vmor %vm986, %vm1003
  %vm1020 = vmor %vm987, %vm1004
  %vm1021 = vmor %vm988, %vm1005
  %vm1022 = vmor %vm989, %vm1006
  %vm1023 = vmor %vm990, %vm1007
  %vm1024 = vmor %vm991, %vm1008
  %vm1025 = vmor %vm992, %vm1009
  %vm1026 = vmor %vm993, %vm1010
  %vm1027 = vmor %vm994, %vm1011
  %v1028 = vsel %vm1012, %v962, 0.0
  %v1029 = vsel %vm1013, %v963, 0.0
  %v1030 = vsel %vm1014, %v964, 0.0
  %v1031 = vsel %vm1015, %v965, 0.0
  %v1032 = vsel %vm1016, %v966, 0.0
  %v1033 = vsel %vm1017, %v967, 0.0
  %v1034 = vsel %vm1018, %v968, 0.0
  %v1035 = vsel %vm1019, %v969, 0.0
  %v1036 = vsel %vm1020, %v970, 0.0
  %v1037 = vsel %vm1021, %v971, 0.0
  %v1038 = vsel %vm1022, %v972, 0.0
  %v1039 = vsel %vm1023, %v973, 0.0
  %v1040 = vsel %vm1024, %v974, 0.0
  %v1041 = vsel %vm1025, %v975, 0.0
  %v1042 = vsel %vm1026, %v976, 0.0
  %v1043 = vsel %vm1027, %v977, 0.0
  %s1044 = scalar_lea.vmem %s1, 128
  %v1045 = vld [vmem:[%s1044] sm:$0xf]
  %v1046 = vld [vmem:[%s1044 + $0x4] sm:$0xf]
  %v1047 = vld [vmem:[%s1044 + $0x8] sm:$0xf]
  %v1048 = vld [vmem:[%s1044 + $0xc] sm:$0xf]
  %v1049 = vld [vmem:[%s1044 + $0x10] sm:$0xf]
  %v1050 = vld [vmem:[%s1044 + $0x14] sm:$0xf]
  %v1051 = vld [vmem:[%s1044 + $0x18] sm:$0xf]
  %v1052 = vld [vmem:[%s1044 + $0x1c] sm:$0xf]
  %v1053 = vld [vmem:[%s1044 + $0x20] sm:$0xf]
  %v1054 = vld [vmem:[%s1044 + $0x24] sm:$0xf]
  %v1055 = vld [vmem:[%s1044 + $0x28] sm:$0xf]
  %v1056 = vld [vmem:[%s1044 + $0x2c] sm:$0xf]
  %v1057 = vld [vmem:[%s1044 + $0x30] sm:$0xf]
  %v1058 = vld [vmem:[%s1044 + $0x34] sm:$0xf]
  %v1059 = vld [vmem:[%s1044 + $0x38] sm:$0xf]
  %v1060 = vld [vmem:[%s1044 + $0x3c] sm:$0xf]
  %v1061 = vunpack.c.l.bf16 %v1045
  %v1062 = vunpack.c.l.bf16 %v1046
  %v1063 = vunpack.c.l.bf16 %v1047
  %v1064 = vunpack.c.l.bf16 %v1048
  %v1065 = vunpack.c.l.bf16 %v1049
  %v1066 = vunpack.c.l.bf16 %v1050
  %v1067 = vunpack.c.l.bf16 %v1051
  %v1068 = vunpack.c.l.bf16 %v1052
  %v1069 = vunpack.c.l.bf16 %v1053
  %v1070 = vunpack.c.l.bf16 %v1054
  %v1071 = vunpack.c.l.bf16 %v1055
  %v1072 = vunpack.c.l.bf16 %v1056
  %v1073 = vunpack.c.l.bf16 %v1057
  %v1074 = vunpack.c.l.bf16 %v1058
  %v1075 = vunpack.c.l.bf16 %v1059
  %v1076 = vunpack.c.l.bf16 %v1060
  %v1077 = vsel %vm31, %v1028, 0.0
  %v1078 = vsel %vm32, %v1029, 0.0
  %v1079 = vsel %vm33, %v1030, 0.0
  %v1080 = vsel %vm34, %v1031, 0.0
  %v1081 = vsel %vm35, %v1032, 0.0
  %v1082 = vsel %vm36, %v1033, 0.0
  %v1083 = vsel %vm37, %v1034, 0.0
  %v1084 = vsel %vm38, %v1035, 0.0
  %v1085 = vsel %vm39, %v1036, 0.0
  %v1086 = vsel %vm40, %v1037, 0.0
  %v1087 = vsel %vm41, %v1038, 0.0
  %v1088 = vsel %vm42, %v1039, 0.0
  %v1089 = vsel %vm43, %v1040, 0.0
  %v1090 = vsel %vm44, %v1041, 0.0
  %v1091 = vsel %vm45, %v1042, 0.0
  %v1092 = vsel %vm46, %v1043, 0.0
  %v1093 = vadd.f32 %v1061, %v1077
  %v1094 = vadd.f32 %v1062, %v1078
  %v1095 = vadd.f32 %v1063, %v1079
  %v1096 = vadd.f32 %v1064, %v1080
  %v1097 = vadd.f32 %v1065, %v1081
  %v1098 = vadd.f32 %v1066, %v1082
  %v1099 = vadd.f32 %v1067, %v1083
  %v1100 = vadd.f32 %v1068, %v1084
  %v1101 = vadd.f32 %v1069, %v1085
  %v1102 = vadd.f32 %v1070, %v1086
  %v1103 = vadd.f32 %v1071, %v1087
  %v1104 = vadd.f32 %v1072, %v1088
  %v1105 = vadd.f32 %v1073, %v1089
  %v1106 = vadd.f32 %v1074, %v1090
  %v1107 = vadd.f32 %v1075, %v1091
  %v1108 = vadd.f32 %v1076, %v1092
  %s1109 = scalar_lea.vmem %s0, 128
  %v1110 = vld [vmem:[%s1109] sm:$0xf]
  %v1111 = vld [vmem:[%s1109 + $0x4] sm:$0xf]
  %v1112 = vld [vmem:[%s1109 + $0x8] sm:$0xf]
  %v1113 = vld [vmem:[%s1109 + $0xc] sm:$0xf]
  %v1114 = vld [vmem:[%s1109 + $0x10] sm:$0xf]
  %v1115 = vld [vmem:[%s1109 + $0x14] sm:$0xf]
  %v1116 = vld [vmem:[%s1109 + $0x18] sm:$0xf]
  %v1117 = vld [vmem:[%s1109 + $0x1c] sm:$0xf]
  %v1118 = vld [vmem:[%s1109 + $0x20] sm:$0xf]
  %v1119 = vld [vmem:[%s1109 + $0x24] sm:$0xf]
  %v1120 = vld [vmem:[%s1109 + $0x28] sm:$0xf]
  %v1121 = vld [vmem:[%s1109 + $0x2c] sm:$0xf]
  %v1122 = vld [vmem:[%s1109 + $0x30] sm:$0xf]
  %v1123 = vld [vmem:[%s1109 + $0x34] sm:$0xf]
  %v1124 = vld [vmem:[%s1109 + $0x38] sm:$0xf]
  %v1125 = vld [vmem:[%s1109 + $0x3c] sm:$0xf]
  %s1126 = scalar_lea.vmem %s1, 192
  %v1127 = vld [vmem:[%s1126] sm:$0xf]
  %v1128 = vld [vmem:[%s1126 + $0x4] sm:$0xf]
  %v1129 = vld [vmem:[%s1126 + $0x8] sm:$0xf]
  %v1130 = vld [vmem:[%s1126 + $0xc] sm:$0xf]
  %v1131 = vld [vmem:[%s1126 + $0x10] sm:$0xf]
  %v1132 = vld [vmem:[%s1126 + $0x14] sm:$0xf]
  %v1133 = vld [vmem:[%s1126 + $0x18] sm:$0xf]
  %v1134 = vld [vmem:[%s1126 + $0x1c] sm:$0xf]
  %v1135 = vld [vmem:[%s1126 + $0x20] sm:$0xf]
  %v1136 = vld [vmem:[%s1126 + $0x24] sm:$0xf]
  %v1137 = vld [vmem:[%s1126 + $0x28] sm:$0xf]
  %v1138 = vld [vmem:[%s1126 + $0x2c] sm:$0xf]
  %v1139 = vld [vmem:[%s1126 + $0x30] sm:$0xf]
  %v1140 = vld [vmem:[%s1126 + $0x34] sm:$0xf]
  %v1141 = vld [vmem:[%s1126 + $0x38] sm:$0xf]
  %v1142 = vld [vmem:[%s1126 + $0x3c] sm:$0xf]
  %v1143 = vpack.c.bf16 %v1094, %v1093
  %v1144 = vpack.c.bf16 %v1096, %v1095
  %v1145 = vpack.c.bf16 %v1098, %v1097
  %v1146 = vpack.c.bf16 %v1100, %v1099
  %v1147 = vpack.c.bf16 %v1102, %v1101
  %v1148 = vpack.c.bf16 %v1104, %v1103
  %v1149 = vpack.c.bf16 %v1106, %v1105
  %v1150 = vpack.c.bf16 %v1108, %v1107
  %v1167 = vunpack.c.l.b16 %v1110
  %v1168 = vunpack.c.l.b16 %v1111
  %v1169 = vunpack.c.l.b16 %v1112
  %v1170 = vunpack.c.l.b16 %v1113
  %v1171 = vunpack.c.l.b16 %v1114
  %v1172 = vunpack.c.l.b16 %v1115
  %v1173 = vunpack.c.l.b16 %v1116
  %v1174 = vunpack.c.l.b16 %v1117
  %v1175 = vunpack.c.l.b16 %v1118
  %v1176 = vunpack.c.l.b16 %v1119
  %v1177 = vunpack.c.l.b16 %v1120
  %v1178 = vunpack.c.l.b16 %v1121
  %v1179 = vunpack.c.l.b16 %v1122
  %v1180 = vunpack.c.l.b16 %v1123
  %v1181 = vunpack.c.l.b16 %v1124
  %v1182 = vunpack.c.l.b16 %v1125
  %v1183 = vpack.c.b16 %v1168, %v1167
  %v1184 = vpack.c.b16 %v1170, %v1169
  %v1185 = vpack.c.b16 %v1172, %v1171
  %v1186 = vpack.c.b16 %v1174, %v1173
  %v1187 = vpack.c.b16 %v1176, %v1175
  %v1188 = vpack.c.b16 %v1178, %v1177
  %v1189 = vpack.c.b16 %v1180, %v1179
  %v1190 = vpack.c.b16 %v1182, %v1181
  %1199 = vmatprep.subr.bf16.mxu0 0
  %1200 = vmatpush1.bf16.msra.mxu0 %v1190
  %1201 = vmatprep.subr.bf16.mxu0 0
  %1202 = vmatpush1.bf16.msra.mxu0 %v1189
  %1203 = vmatprep.subr.bf16.mxu0 0
  %1204 = vmatpush1.bf16.msra.mxu0 %v1188
  %1205 = vmatprep.subr.bf16.mxu0 0
  %1206 = vmatpush1.bf16.msra.mxu0 %v1187
  %1207 = vmatprep.subr.bf16.mxu0 0
  %1208 = vmatpush1.bf16.msra.mxu0 %v1186
  %1209 = vmatprep.subr.bf16.mxu0 0
  %1210 = vmatpush1.bf16.msra.mxu0 %v1185
  %1211 = vmatprep.subr.bf16.mxu0 0
  %1212 = vmatpush1.bf16.msra.mxu0 %v1184
  %1213 = vmatprep.subr.bf16.mxu0 0
  %1214 = vmatpush1.bf16.msra.mxu0 %v1183
  %1215 = vmatprep.subr.bf16.mxu0 0
  %1216 = vmatpush2.bf16.msra.mxu0 0
  %1217 = vmatprep.subr.bf16.mxu0 0
  %1218 = vmatpush2.bf16.msra.mxu0 0
  %1219 = vmatprep.subr.bf16.mxu0 0
  %1220 = vmatpush2.bf16.msra.mxu0 0
  %1221 = vmatprep.subr.bf16.mxu0 0
  %1222 = vmatpush2.bf16.msra.mxu0 0
  %1223 = vmatprep.subr.bf16.mxu0 0
  %1224 = vmatpush2.bf16.msra.mxu0 0
  %1225 = vmatprep.subr.bf16.mxu0 0
  %1226 = vmatpush2.bf16.msra.mxu0 0
  %1227 = vmatprep.subr.bf16.mxu0 0
  %1228 = vmatpush2.bf16.msra.mxu0 0
  %1229 = vmatprep.subr.bf16.mxu0 0
  %1230 = vmatpush2.bf16.msra.mxu0 0
  %1231 = vmatprep.mubr.bf16.mxu0 0
  %1232 = vmatmul.mubr.bf16.gmra.mxu0 %v1143
  %v1233 = vpop.f32.mrf.mxu0
  %v1234 = vadd.f32 0.0, %v1233
  %v1235 = vpop.f32.mrf.mxu0
  %v1236 = vpop.f32.mrf.mxu0
  %v1237 = vadd.f32 0.0, %v1236
  %v1238 = vpop.f32.mrf.mxu0
  %1239 = vmatprep.mubr.bf16.mxu0 0
  %1240 = vmatmul.mubr.bf16.gmra.mxu0 %v1144
  %v1241 = vpop.f32.mrf.mxu0
  %v1242 = vadd.f32 0.0, %v1241
  %v1243 = vpop.f32.mrf.mxu0
  %v1244 = vpop.f32.mrf.mxu0
  %v1245 = vadd.f32 0.0, %v1244
  %v1246 = vpop.f32.mrf.mxu0
  %1247 = vmatprep.mubr.bf16.mxu0 0
  %1248 = vmatmul.mubr.bf16.gmra.mxu0 %v1145
  %v1249 = vpop.f32.mrf.mxu0
  %v1250 = vadd.f32 0.0, %v1249
  %v1251 = vpop.f32.mrf.mxu0
  %v1252 = vpop.f32.mrf.mxu0
  %v1253 = vadd.f32 0.0, %v1252
  %v1254 = vpop.f32.mrf.mxu0
  %1255 = vmatprep.mubr.bf16.mxu0 0
  %1256 = vmatmul.mubr.bf16.gmra.mxu0 %v1146
  %v1257 = vpop.f32.mrf.mxu0
  %v1258 = vadd.f32 0.0, %v1257
  %v1259 = vpop.f32.mrf.mxu0
  %v1260 = vpop.f32.mrf.mxu0
  %v1261 = vadd.f32 0.0, %v1260
  %v1262 = vpop.f32.mrf.mxu0
  %1263 = vmatprep.mubr.bf16.mxu0 0
  %1264 = vmatmul.mubr.bf16.gmra.mxu0 %v1147
  %v1265 = vpop.f32.mrf.mxu0
  %v1266 = vadd.f32 0.0, %v1265
  %v1267 = vpop.f32.mrf.mxu0
  %v1268 = vpop.f32.mrf.mxu0
  %v1269 = vadd.f32 0.0, %v1268
  %v1270 = vpop.f32.mrf.mxu0
  %1271 = vmatprep.mubr.bf16.mxu0 0
  %1272 = vmatmul.mubr.bf16.gmra.mxu0 %v1148
  %v1273 = vpop.f32.mrf.mxu0
  %v1274 = vadd.f32 0.0, %v1273
  %v1275 = vpop.f32.mrf.mxu0
  %v1276 = vpop.f32.mrf.mxu0
  %v1277 = vadd.f32 0.0, %v1276
  %v1278 = vpop.f32.mrf.mxu0
  %1279 = vmatprep.mubr.bf16.mxu0 0
  %1280 = vmatmul.mubr.bf16.gmra.mxu0 %v1149
  %v1281 = vpop.f32.mrf.mxu0
  %v1282 = vadd.f32 0.0, %v1281
  %v1283 = vpop.f32.mrf.mxu0
  %v1284 = vpop.f32.mrf.mxu0
  %v1285 = vadd.f32 0.0, %v1284
  %v1286 = vpop.f32.mrf.mxu0
  %1287 = vmatprep.mubr.bf16.mxu0 0
  %1288 = vmatmul.mubr.bf16.gmra.mxu0 %v1150
  %v1289 = vpop.f32.mrf.mxu0
  %v1290 = vadd.f32 0.0, %v1289
  %v1291 = vpop.f32.mrf.mxu0
  %v1292 = vpop.f32.mrf.mxu0
  %v1293 = vadd.f32 0.0, %v1292
  %v1294 = vpop.f32.mrf.mxu0
  %1295 = vdwg.mxu0
  %v1296 = vpack.c.bf16 %v1237, %v1234
  %v1297 = vpack.c.bf16 %v1245, %v1242
  %v1298 = vpack.c.bf16 %v1253, %v1250
  %v1299 = vpack.c.bf16 %v1261, %v1258
  %v1300 = vpack.c.bf16 %v1269, %v1266
  %v1301 = vpack.c.bf16 %v1277, %v1274
  %v1302 = vpack.c.bf16 %v1285, %v1282
  %v1303 = vpack.c.bf16 %v1293, %v1290
  %v1320 = vunpack.c.l.b16 %v1127
  %v1321 = vunpack.c.l.b16 %v1128
  %v1322 = vunpack.c.l.b16 %v1129
  %v1323 = vunpack.c.l.b16 %v1130
  %v1324 = vunpack.c.l.b16 %v1131
  %v1325 = vunpack.c.l.b16 %v1132
  %v1326 = vunpack.c.l.b16 %v1133
  %v1327 = vunpack.c.l.b16 %v1134
  %v1328 = vunpack.c.l.b16 %v1135
  %v1329 = vunpack.c.l.b16 %v1136
  %v1330 = vunpack.c.l.b16 %v1137
  %v1331 = vunpack.c.l.b16 %v1138
  %v1332 = vunpack.c.l.b16 %v1139
  %v1333 = vunpack.c.l.b16 %v1140
  %v1334 = vunpack.c.l.b16 %v1141
  %v1335 = vunpack.c.l.b16 %v1142
  %v1336 = vpack.c.b16 %v1321, %v1320
  %v1337 = vpack.c.b16 %v1323, %v1322
  %v1338 = vpack.c.b16 %v1325, %v1324
  %v1339 = vpack.c.b16 %v1327, %v1326
  %v1340 = vpack.c.b16 %v1329, %v1328
  %v1341 = vpack.c.b16 %v1331, %v1330
  %v1342 = vpack.c.b16 %v1333, %v1332
  %v1343 = vpack.c.b16 %v1335, %v1334
  %1352 = vmatprep.subr.bf16.mxu0 0
  %1353 = vmatpush1.bf16.msra.mxu0 %v1303
  %1354 = vmatprep.subr.bf16.mxu0 0
  %1355 = vmatpush1.bf16.msra.mxu0 %v1302
  %1356 = vmatprep.subr.bf16.mxu0 0
  %1357 = vmatpush1.bf16.msra.mxu0 %v1301
  %1358 = vmatprep.subr.bf16.mxu0 0
  %1359 = vmatpush1.bf16.msra.mxu0 %v1300
  %1360 = vmatprep.subr.bf16.mxu0 0
  %1361 = vmatpush1.bf16.msra.mxu0 %v1299
  %1362 = vmatprep.subr.bf16.mxu0 0
  %1363 = vmatpush1.bf16.msra.mxu0 %v1298
  %1364 = vmatprep.subr.bf16.mxu0 0
  %1365 = vmatpush1.bf16.msra.mxu0 %v1297
  %1366 = vmatprep.subr.bf16.mxu0 0
  %1367 = vmatpush1.bf16.msra.mxu0 %v1296
  %1368 = vmatprep.subr.bf16.mxu0 0
  %1369 = vmatpush2.bf16.msra.mxu0 0
  %1370 = vmatprep.subr.bf16.mxu0 0
  %1371 = vmatpush2.bf16.msra.mxu0 0
  %1372 = vmatprep.subr.bf16.mxu0 0
  %1373 = vmatpush2.bf16.msra.mxu0 0
  %1374 = vmatprep.subr.bf16.mxu0 0
  %1375 = vmatpush2.bf16.msra.mxu0 0
  %1376 = vmatprep.subr.bf16.mxu0 0
  %1377 = vmatpush2.bf16.msra.mxu0 0
  %1378 = vmatprep.subr.bf16.mxu0 0
  %1379 = vmatpush2.bf16.msra.mxu0 0
  %1380 = vmatprep.subr.bf16.mxu0 0
  %1381 = vmatpush2.bf16.msra.mxu0 0
  %1382 = vmatprep.subr.bf16.mxu0 0
  %1383 = vmatpush2.bf16.msra.mxu0 0
  %1384 = vmatprep.mubr.bf16.mxu0 0
  %1385 = vmatmul.mubr.bf16.gmra.mxu0 %v1336
  %v1386 = vpop.f32.mrf.mxu0
  %v1387 = vadd.f32 0.0, %v1386
  %v1388 = vpop.f32.mrf.mxu0
  %v1389 = vpop.f32.mrf.mxu0
  %v1390 = vadd.f32 0.0, %v1389
  %v1391 = vpop.f32.mrf.mxu0
  %1392 = vmatprep.mubr.bf16.mxu0 0
  %1393 = vmatmul.mubr.bf16.gmra.mxu0 %v1337
  %v1394 = vpop.f32.mrf.mxu0
  %v1395 = vadd.f32 0.0, %v1394
  %v1396 = vpop.f32.mrf.mxu0
  %v1397 = vpop.f32.mrf.mxu0
  %v1398 = vadd.f32 0.0, %v1397
  %v1399 = vpop.f32.mrf.mxu0
  %1400 = vmatprep.mubr.bf16.mxu0 0
  %1401 = vmatmul.mubr.bf16.gmra.mxu0 %v1338
  %v1402 = vpop.f32.mrf.mxu0
  %v1403 = vadd.f32 0.0, %v1402
  %v1404 = vpop.f32.mrf.mxu0
  %v1405 = vpop.f32.mrf.mxu0
  %v1406 = vadd.f32 0.0, %v1405
  %v1407 = vpop.f32.mrf.mxu0
  %1408 = vmatprep.mubr.bf16.mxu0 0
  %1409 = vmatmul.mubr.bf16.gmra.mxu0 %v1339
  %v1410 = vpop.f32.mrf.mxu0
  %v1411 = vadd.f32 0.0, %v1410
  %v1412 = vpop.f32.mrf.mxu0
  %v1413 = vpop.f32.mrf.mxu0
  %v1414 = vadd.f32 0.0, %v1413
  %v1415 = vpop.f32.mrf.mxu0
  %1416 = vmatprep.mubr.bf16.mxu0 0
  %1417 = vmatmul.mubr.bf16.gmra.mxu0 %v1340
  %v1418 = vpop.f32.mrf.mxu0
  %v1419 = vadd.f32 0.0, %v1418
  %v1420 = vpop.f32.mrf.mxu0
  %v1421 = vpop.f32.mrf.mxu0
  %v1422 = vadd.f32 0.0, %v1421
  %v1423 = vpop.f32.mrf.mxu0
  %1424 = vmatprep.mubr.bf16.mxu0 0
  %1425 = vmatmul.mubr.bf16.gmra.mxu0 %v1341
  %v1426 = vpop.f32.mrf.mxu0
  %v1427 = vadd.f32 0.0, %v1426
  %v1428 = vpop.f32.mrf.mxu0
  %v1429 = vpop.f32.mrf.mxu0
  %v1430 = vadd.f32 0.0, %v1429
  %v1431 = vpop.f32.mrf.mxu0
  %1432 = vmatprep.mubr.bf16.mxu0 0
  %1433 = vmatmul.mubr.bf16.gmra.mxu0 %v1342
  %v1434 = vpop.f32.mrf.mxu0
  %v1435 = vadd.f32 0.0, %v1434
  %v1436 = vpop.f32.mrf.mxu0
  %v1437 = vpop.f32.mrf.mxu0
  %v1438 = vadd.f32 0.0, %v1437
  %v1439 = vpop.f32.mrf.mxu0
  %1440 = vmatprep.mubr.bf16.mxu0 0
  %1441 = vmatmul.mubr.bf16.gmra.mxu0 %v1343
  %v1442 = vpop.f32.mrf.mxu0
  %v1443 = vadd.f32 0.0, %v1442
  %v1444 = vpop.f32.mrf.mxu0
  %v1445 = vpop.f32.mrf.mxu0
  %v1446 = vadd.f32 0.0, %v1445
  %v1447 = vpop.f32.mrf.mxu0
  %1448 = vdwg.mxu0
  %v1449 = vadd.f32 %v1234, %v1387
  %v1450 = vadd.f32 %v1237, %v1390
  %v1451 = vadd.f32 %v1242, %v1395
  %v1452 = vadd.f32 %v1245, %v1398
  %v1453 = vadd.f32 %v1250, %v1403
  %v1454 = vadd.f32 %v1253, %v1406
  %v1455 = vadd.f32 %v1258, %v1411
  %v1456 = vadd.f32 %v1261, %v1414
  %v1457 = vadd.f32 %v1266, %v1419
  %v1458 = vadd.f32 %v1269, %v1422
  %v1459 = vadd.f32 %v1274, %v1427
  %v1460 = vadd.f32 %v1277, %v1430
  %v1461 = vadd.f32 %v1282, %v1435
  %v1462 = vadd.f32 %v1285, %v1438
  %v1463 = vadd.f32 %v1290, %v1443
  %v1464 = vadd.f32 %v1293, %v1446
  %v1465 = vmax.f32 %v1449, 0.0
  %v1466 = vmax.f32 %v1450, 0.0
  %v1467 = vmax.f32 %v1451, 0.0
  %v1468 = vmax.f32 %v1452, 0.0
  %v1469 = vmax.f32 %v1453, 0.0
  %v1470 = vmax.f32 %v1454, 0.0
  %v1471 = vmax.f32 %v1455, 0.0
  %v1472 = vmax.f32 %v1456, 0.0
  %v1473 = vmax.f32 %v1457, 0.0
  %v1474 = vmax.f32 %v1458, 0.0
  %v1475 = vmax.f32 %v1459, 0.0
  %v1476 = vmax.f32 %v1460, 0.0
  %v1477 = vmax.f32 %v1461, 0.0
  %v1478 = vmax.f32 %v1462, 0.0
  %v1479 = vmax.f32 %v1463, 0.0
  %v1480 = vmax.f32 %v1464, 0.0
  %v1481 = vsel %vm639, %v1465, 0.0
  %v1482 = vsel %vm640, %v1466, 0.0
  %v1483 = vsel %vm641, %v1467, 0.0
  %v1484 = vsel %vm642, %v1468, 0.0
  %v1485 = vsel %vm643, %v1469, 0.0
  %v1486 = vsel %vm644, %v1470, 0.0
  %v1487 = vsel %vm645, %v1471, 0.0
  %v1488 = vsel %vm646, %v1472, 0.0
  %v1489 = vsel %vm647, %v1473, 0.0
  %v1490 = vsel %vm648, %v1474, 0.0
  %v1491 = vsel %vm649, %v1475, 0.0
  %v1492 = vsel %vm650, %v1476, 0.0
  %v1493 = vsel %vm651, %v1477, 0.0
  %v1494 = vsel %vm652, %v1478, 0.0
  %v1495 = vsel %vm653, %v1479, 0.0
  %v1496 = vsel %vm654, %v1480, 0.0
  %v1497 = vadd.f32 %v1481, %v145
  %v1498 = vadd.f32 %v1482, %v146
  %v1499 = vadd.f32 %v1483, %v147
  %v1500 = vadd.f32 %v1484, %v148
  %v1501 = vadd.f32 %v1485, %v149
  %v1502 = vadd.f32 %v1486, %v150
  %v1503 = vadd.f32 %v1487, %v151
  %v1504 = vadd.f32 %v1488, %v152
  %v1505 = vadd.f32 %v1489, %v153
  %v1506 = vadd.f32 %v1490, %v154
  %v1507 = vadd.f32 %v1491, %v155
  %v1508 = vadd.f32 %v1492, %v156
  %v1509 = vadd.f32 %v1493, %v157
  %v1510 = vadd.f32 %v1494, %v158
  %v1511 = vadd.f32 %v1495, %v159
  %v1512 = vadd.f32 %v1496, %v160
  %s1513 = scalar_lea.vmem %s0, 192
  %v1514 = vld [vmem:[%s1513] sm:$0xf]
  %v1515 = vld [vmem:[%s1513 + $0x4] sm:$0xf]
  %v1516 = vld [vmem:[%s1513 + $0x8] sm:$0xf]
  %v1517 = vld [vmem:[%s1513 + $0xc] sm:$0xf]
  %v1518 = vld [vmem:[%s1513 + $0x10] sm:$0xf]
  %v1519 = vld [vmem:[%s1513 + $0x14] sm:$0xf]
  %v1520 = vld [vmem:[%s1513 + $0x18] sm:$0xf]
  %v1521 = vld [vmem:[%s1513 + $0x1c] sm:$0xf]
  %v1522 = vld [vmem:[%s1513 + $0x20] sm:$0xf]
  %v1523 = vld [vmem:[%s1513 + $0x24] sm:$0xf]
  %v1524 = vld [vmem:[%s1513 + $0x28] sm:$0xf]
  %v1525 = vld [vmem:[%s1513 + $0x2c] sm:$0xf]
  %v1526 = vld [vmem:[%s1513 + $0x30] sm:$0xf]
  %v1527 = vld [vmem:[%s1513 + $0x34] sm:$0xf]
  %v1528 = vld [vmem:[%s1513 + $0x38] sm:$0xf]
  %v1529 = vld [vmem:[%s1513 + $0x3c] sm:$0xf]
  %v1530 = vpack.c.bf16 %v1498, %v1497
  %v1531 = vpack.c.bf16 %v1500, %v1499
  %v1532 = vpack.c.bf16 %v1502, %v1501
  %v1533 = vpack.c.bf16 %v1504, %v1503
  %v1534 = vpack.c.bf16 %v1506, %v1505
  %v1535 = vpack.c.bf16 %v1508, %v1507
  %v1536 = vpack.c.bf16 %v1510, %v1509
  %v1537 = vpack.c.bf16 %v1512, %v1511
  %v1554 = vunpack.c.l.b16 %v1514
  %v1555 = vunpack.c.l.b16 %v1515
  %v1556 = vunpack.c.l.b16 %v1516
  %v1557 = vunpack.c.l.b16 %v1517
  %v1558 = vunpack.c.l.b16 %v1518
  %v1559 = vunpack.c.l.b16 %v1519
  %v1560 = vunpack.c.l.b16 %v1520
  %v1561 = vunpack.c.l.b16 %v1521
  %v1562 = vunpack.c.l.b16 %v1522
  %v1563 = vunpack.c.l.b16 %v1523
  %v1564 = vunpack.c.l.b16 %v1524
  %v1565 = vunpack.c.l.b16 %v1525
  %v1566 = vunpack.c.l.b16 %v1526
  %v1567 = vunpack.c.l.b16 %v1527
  %v1568 = vunpack.c.l.b16 %v1528
  %v1569 = vunpack.c.l.b16 %v1529
  %v1570 = vpack.c.b16 %v1555, %v1554
  %v1571 = vpack.c.b16 %v1557, %v1556
  %v1572 = vpack.c.b16 %v1559, %v1558
  %v1573 = vpack.c.b16 %v1561, %v1560
  %v1574 = vpack.c.b16 %v1563, %v1562
  %v1575 = vpack.c.b16 %v1565, %v1564
  %v1576 = vpack.c.b16 %v1567, %v1566
  %v1577 = vpack.c.b16 %v1569, %v1568
  %1586 = vmatprep.subr.bf16.mxu0 0
  %1587 = vmatpush1.bf16.msra.mxu0 %v1577
  %1588 = vmatprep.subr.bf16.mxu0 0
  %1589 = vmatpush1.bf16.msra.mxu0 %v1576
  %1590 = vmatprep.subr.bf16.mxu0 0
  %1591 = vmatpush1.bf16.msra.mxu0 %v1575
  %1592 = vmatprep.subr.bf16.mxu0 0
  %1593 = vmatpush1.bf16.msra.mxu0 %v1574
  %1594 = vmatprep.subr.bf16.mxu0 0
  %1595 = vmatpush1.bf16.msra.mxu0 %v1573
  %1596 = vmatprep.subr.bf16.mxu0 0
  %1597 = vmatpush1.bf16.msra.mxu0 %v1572
  %1598 = vmatprep.subr.bf16.mxu0 0
  %1599 = vmatpush1.bf16.msra.mxu0 %v1571
  %1600 = vmatprep.subr.bf16.mxu0 0
  %1601 = vmatpush1.bf16.msra.mxu0 %v1570
  %1602 = vmatprep.subr.bf16.mxu0 0
  %1603 = vmatpush2.bf16.msra.mxu0 0
  %1604 = vmatprep.subr.bf16.mxu0 0
  %1605 = vmatpush2.bf16.msra.mxu0 0
  %1606 = vmatprep.subr.bf16.mxu0 0
  %1607 = vmatpush2.bf16.msra.mxu0 0
  %1608 = vmatprep.subr.bf16.mxu0 0
  %1609 = vmatpush2.bf16.msra.mxu0 0
  %1610 = vmatprep.subr.bf16.mxu0 0
  %1611 = vmatpush2.bf16.msra.mxu0 0
  %1612 = vmatprep.subr.bf16.mxu0 0
  %1613 = vmatpush2.bf16.msra.mxu0 0
  %1614 = vmatprep.subr.bf16.mxu0 0
  %1615 = vmatpush2.bf16.msra.mxu0 0
  %1616 = vmatprep.subr.bf16.mxu0 0
  %1617 = vmatpush2.bf16.msra.mxu0 0
  %1618 = vmatprep.mubr.bf16.mxu0 0
  %1619 = vmatmul.mubr.bf16.gmra.mxu0 %v1530
  %v1620 = vpop.f32.mrf.mxu0
  %v1621 = vadd.f32 0.0, %v1620
  %v1622 = vpop.f32.mrf.mxu0
  %v1623 = vpop.f32.mrf.mxu0
  %v1624 = vadd.f32 0.0, %v1623
  %v1625 = vpop.f32.mrf.mxu0
  %1626 = vmatprep.mubr.bf16.mxu0 0
  %1627 = vmatmul.mubr.bf16.gmra.mxu0 %v1531
  %v1628 = vpop.f32.mrf.mxu0
  %v1629 = vadd.f32 0.0, %v1628
  %v1630 = vpop.f32.mrf.mxu0
  %v1631 = vpop.f32.mrf.mxu0
  %v1632 = vadd.f32 0.0, %v1631
  %v1633 = vpop.f32.mrf.mxu0
  %1634 = vmatprep.mubr.bf16.mxu0 0
  %1635 = vmatmul.mubr.bf16.gmra.mxu0 %v1532
  %v1636 = vpop.f32.mrf.mxu0
  %v1637 = vadd.f32 0.0, %v1636
  %v1638 = vpop.f32.mrf.mxu0
  %v1639 = vpop.f32.mrf.mxu0
  %v1640 = vadd.f32 0.0, %v1639
  %v1641 = vpop.f32.mrf.mxu0
  %1642 = vmatprep.mubr.bf16.mxu0 0
  %1643 = vmatmul.mubr.bf16.gmra.mxu0 %v1533
  %v1644 = vpop.f32.mrf.mxu0
  %v1645 = vadd.f32 0.0, %v1644
  %v1646 = vpop.f32.mrf.mxu0
  %v1647 = vpop.f32.mrf.mxu0
  %v1648 = vadd.f32 0.0, %v1647
  %v1649 = vpop.f32.mrf.mxu0
  %1650 = vmatprep.mubr.bf16.mxu0 0
  %1651 = vmatmul.mubr.bf16.gmra.mxu0 %v1534
  %v1652 = vpop.f32.mrf.mxu0
  %v1653 = vadd.f32 0.0, %v1652
  %v1654 = vpop.f32.mrf.mxu0
  %v1655 = vpop.f32.mrf.mxu0
  %v1656 = vadd.f32 0.0, %v1655
  %v1657 = vpop.f32.mrf.mxu0
  %1658 = vmatprep.mubr.bf16.mxu0 0
  %1659 = vmatmul.mubr.bf16.gmra.mxu0 %v1535
  %v1660 = vpop.f32.mrf.mxu0
  %v1661 = vadd.f32 0.0, %v1660
  %v1662 = vpop.f32.mrf.mxu0
  %v1663 = vpop.f32.mrf.mxu0
  %v1664 = vadd.f32 0.0, %v1663
  %v1665 = vpop.f32.mrf.mxu0
  %1666 = vmatprep.mubr.bf16.mxu0 0
  %1667 = vmatmul.mubr.bf16.gmra.mxu0 %v1536
  %v1668 = vpop.f32.mrf.mxu0
  %v1669 = vadd.f32 0.0, %v1668
  %v1670 = vpop.f32.mrf.mxu0
  %v1671 = vpop.f32.mrf.mxu0
  %v1672 = vadd.f32 0.0, %v1671
  %v1673 = vpop.f32.mrf.mxu0
  %1674 = vmatprep.mubr.bf16.mxu0 0
  %1675 = vmatmul.mubr.bf16.gmra.mxu0 %v1537
  %v1676 = vpop.f32.mrf.mxu0
  %v1677 = vadd.f32 0.0, %v1676
  %v1678 = vpop.f32.mrf.mxu0
  %v1679 = vpop.f32.mrf.mxu0
  %v1680 = vadd.f32 0.0, %v1679
  %v1681 = vpop.f32.mrf.mxu0
  %1682 = vdwg.mxu0
  %v1683 = vpack.c.bf16 %v1624, %v1621
  %v1684 = vpack.c.bf16 %v1632, %v1629
  %v1685 = vpack.c.bf16 %v1640, %v1637
  %v1686 = vpack.c.bf16 %v1648, %v1645
  %v1687 = vpack.c.bf16 %v1656, %v1653
  %v1688 = vpack.c.bf16 %v1664, %v1661
  %v1689 = vpack.c.bf16 %v1672, %v1669
  %v1690 = vpack.c.bf16 %v1680, %v1677
  %1691 = vmatprep.subr.bf16.mxu0 0
  %1692 = vmatpush1.bf16.msra.mxu0 %v1690
  %1693 = vmatprep.subr.bf16.mxu0 0
  %1694 = vmatpush1.bf16.msra.mxu0 %v1689
  %1695 = vmatprep.subr.bf16.mxu0 0
  %1696 = vmatpush1.bf16.msra.mxu0 %v1688
  %1697 = vmatprep.subr.bf16.mxu0 0
  %1698 = vmatpush1.bf16.msra.mxu0 %v1687
  %1699 = vmatprep.subr.bf16.mxu0 0
  %1700 = vmatpush1.bf16.msra.mxu0 %v1686
  %1701 = vmatprep.subr.bf16.mxu0 0
  %1702 = vmatpush1.bf16.msra.mxu0 %v1685
  %1703 = vmatprep.subr.bf16.mxu0 0
  %1704 = vmatpush1.bf16.msra.mxu0 %v1684
  %1705 = vmatprep.subr.bf16.mxu0 0
  %1706 = vmatpush1.bf16.msra.mxu0 %v1683
  %1707 = vmatprep.subr.bf16.mxu0 0
  %1708 = vmatpush2.bf16.msra.mxu0 0
  %1709 = vmatprep.subr.bf16.mxu0 0
  %1710 = vmatpush2.bf16.msra.mxu0 0
  %1711 = vmatprep.subr.bf16.mxu0 0
  %1712 = vmatpush2.bf16.msra.mxu0 0
  %1713 = vmatprep.subr.bf16.mxu0 0
  %1714 = vmatpush2.bf16.msra.mxu0 0
  %1715 = vmatprep.subr.bf16.mxu0 0
  %1716 = vmatpush2.bf16.msra.mxu0 0
  %1717 = vmatprep.subr.bf16.mxu0 0
  %1718 = vmatpush2.bf16.msra.mxu0 0
  %1719 = vmatprep.subr.bf16.mxu0 0
  %1720 = vmatpush2.bf16.msra.mxu0 0
  %1721 = vmatprep.subr.bf16.mxu0 0
  %1722 = vmatpush2.bf16.msra.mxu0 0
  %1723 = vmatprep.mubr.bf16.mxu0 0
  %1724 = vmatmul.mubr.bf16.gmra.mxu0 %v1336
  %v1725 = vpop.f32.mrf.mxu0
  %v1726 = vadd.f32 0.0, %v1725
  %v1727 = vpop.f32.mrf.mxu0
  %v1728 = vpop.f32.mrf.mxu0
  %v1729 = vadd.f32 0.0, %v1728
  %v1730 = vpop.f32.mrf.mxu0
  %1731 = vmatprep.mubr.bf16.mxu0 0
  %1732 = vmatmul.mubr.bf16.gmra.mxu0 %v1337
  %v1733 = vpop.f32.mrf.mxu0
  %v1734 = vpop.f32.mrf.mxu0
  %v1735 = vpop.f32.mrf.mxu0
  %v1736 = vpop.f32.mrf.mxu0
  %1737 = vmatprep.mubr.bf16.mxu0 0
  %1738 = vmatmul.mubr.bf16.gmra.mxu0 %v1338
  %v1739 = vpop.f32.mrf.mxu0
  %v1740 = vpop.f32.mrf.mxu0
  %v1741 = vpop.f32.mrf.mxu0
  %v1742 = vpop.f32.mrf.mxu0
  %1743 = vmatprep.mubr.bf16.mxu0 0
  %1744 = vmatmul.mubr.bf16.gmra.mxu0 %v1339
  %v1745 = vpop.f32.mrf.mxu0
  %v1746 = vpop.f32.mrf.mxu0
  %v1747 = vpop.f32.mrf.mxu0
  %v1748 = vpop.f32.mrf.mxu0
  %1749 = vmatprep.mubr.bf16.mxu0 0
  %1750 = vmatmul.mubr.bf16.gmra.mxu0 %v1340
  %v1751 = vpop.f32.mrf.mxu0
  %v1752 = vpop.f32.mrf.mxu0
  %v1753 = vpop.f32.mrf.mxu0
  %v1754 = vpop.f32.mrf.mxu0
  %1755 = vmatprep.mubr.bf16.mxu0 0
  %1756 = vmatmul.mubr.bf16.gmra.mxu0 %v1341
  %v1757 = vpop.f32.mrf.mxu0
  %v1758 = vpop.f32.mrf.mxu0
  %v1759 = vpop.f32.mrf.mxu0
  %v1760 = vpop.f32.mrf.mxu0
  %1761 = vmatprep.mubr.bf16.mxu0 0
  %1762 = vmatmul.mubr.bf16.gmra.mxu0 %v1342
  %v1763 = vpop.f32.mrf.mxu0
  %v1764 = vpop.f32.mrf.mxu0
  %v1765 = vpop.f32.mrf.mxu0
  %v1766 = vpop.f32.mrf.mxu0
  %1767 = vmatprep.mubr.bf16.mxu0 0
  %1768 = vmatmul.mubr.bf16.gmra.mxu0 %v1343
  %v1769 = vpop.f32.mrf.mxu0
  %v1770 = vpop.f32.mrf.mxu0
  %v1771 = vpop.f32.mrf.mxu0
  %v1772 = vpop.f32.mrf.mxu0
  %1773 = vdwg.mxu0
  %v1774 = vadd.f32 %v1621, %v1726
  %v1775 = vadd.f32 %v1624, %v1729
  %vm1776 = vcmp.lt.s32.totalorder %v30, 3
  %vm1777 = vmand %vm31, %vm1776
  %vm1778 = vmand %vm32, %vm1776
  %vm1779 = vcmp.lt.s32.totalorder %v30, 43
  %vm1780 = vmand %vm606, %vm1779
  %vm1781 = vmand %vm607, %vm1779
  %vm1782 = vmor %vm1777, %vm1780
  %vm1783 = vmor %vm1778, %vm1781
  %v1784 = vsel %vm1782, %v1774, 0.0
  %v1785 = vsel %vm1783, %v1775, 0.0
  %1786 = vst [vmem:[%s2] sm:$0xff] %v1784
  %1787 = vst [vmem:[%s2 + $0x8] sm:$0xff] %v1785
  // Predicated region
  $region10: #{compgcn_aug_p_forward.1} parent=0 // pred_check
    _
  $region11: #{compgcn_aug_p_forward.1} parent=0 // pred_check_branch
    %1789 = sbr.rel (0) target = $region13
  $region12: #{compgcn_aug_p_forward.1} parent=0 // pred_region
    _
  $region13: #{compgcn_aug_p_forward.1} parent=0 // pred_fallthru
    _
  // Predicated region
  $region14: #{compgcn_aug_p_forward.1} parent=0 // pred_check
    _
  $region15: #{compgcn_aug_p_forward.1} parent=0 // pred_check_branch
    %1791 = sbr.rel (0) target = $region17
  $region16: #{compgcn_aug_p_forward.1} parent=0 // pred_region
    _
  $region17: #{compgcn_aug_p_forward.1} parent=0 // pred_fallthru
    _

</llo_original>
